<compile_context>
chip_gen: v5e
topology: v5e:2x2
jax: 0.10.0
libtpu: 0.0.40
codegen_flags: <defaults>
</compile_context>

<pallas_src>
import functools

import jax
import jax.numpy as jnp
from jax import lax
from jax.experimental import pallas as pl
from jax.experimental.pallas import tpu as pltpu

_INV_SQRT2 = 0.7071067811865476

# Row layout of the packed per-feature vector block (16, D), f32.
_ROW_B1, _ROW_BS, _ROW_BC1 = 0, 1, 2
_ROW_LN1_G, _ROW_LN1_B = 3, 4
_ROW_B2 = 5
_ROW_LNC_G, _ROW_LNC_B = 6, 7
_ROW_BC2 = 8
_VEC_ROWS = 16  # padded to a sublane multiple


def _dyn_res_kernel(x_ref, wx_ref, w2_ref, wc2_ref, vec_ref, o_ref, *,
                    approximate_gelu):
    f32 = jnp.float32
    bf16 = jnp.bfloat16

    # Single hoisted load of all per-feature vectors (one packed block).
    vec = vec_ref[...].astype(f32)                       # (16, D)
    b1 = vec[_ROW_B1:_ROW_B1 + 1]
    bs = vec[_ROW_BS:_ROW_BS + 1]
    bc1 = vec[_ROW_BC1:_ROW_BC1 + 1]
    g1 = vec[_ROW_LN1_G:_ROW_LN1_G + 1]
    be1 = vec[_ROW_LN1_B:_ROW_LN1_B + 1]
    b2 = vec[_ROW_B2:_ROW_B2 + 1]
    gc = vec[_ROW_LNC_G:_ROW_LNC_G + 1]
    bec = vec[_ROW_LNC_B:_ROW_LNC_B + 1]
    bc2 = vec[_ROW_BC2:_ROW_BC2 + 1]

    def layernorm(v, g, b, eps=1e-5):
        mu = jnp.mean(v, axis=-1, keepdims=True)
        var = jnp.mean((v - mu) * (v - mu), axis=-1, keepdims=True)
        return (v - mu) * lax.rsqrt(var + eps) * g + b

    def gelu(v):
        if approximate_gelu:
            # tanh approximation: runs on the EUP slot (co-issues with MXU/VALU)
            return jax.nn.gelu(v, approximate=True)
        # exact erf formulation (nn.GELU() default)
        return 0.5 * v * (1.0 + lax.erf(v * _INV_SQRT2))

    x_bf = x_ref[...].astype(bf16)

    # Three (D, D) MXU matmuls against static, lane-aligned views of the
    # stacked weight (no (tile_b, 3D) f32 intermediate, no slice copies).
    h_pre = jnp.dot(x_bf, wx_ref[0], preferred_element_type=f32) + b1
    sc = jnp.dot(x_bf, wx_ref[1], preferred_element_type=f32) + bs
    c_pre = jnp.dot(x_bf, wx_ref[2], preferred_element_type=f32) + bc1

    # ---- CoefficientNetwork: sigmoid(fc2(dropout(LN(gelu(fc1(x)))))) ----
    c = layernorm(gelu(c_pre), gc, bec)
    # dropout: identity in eval mode
    c = jax.nn.sigmoid(
        jnp.dot(c.astype(bf16), wc2_ref[...], preferred_element_type=f32) + bc2)

    # ---- Main branch: fc2(dropout(gelu(LN(fc1(x))))) ----
    h = gelu(layernorm(h_pre, g1, be1))
    # dropout: identity in eval mode
    h = jnp.dot(h.astype(bf16), w2_ref[...], preferred_element_type=f32) + b2

    # ---- out = main + coeff * shortcut ----
    o_ref[...] = (h + c * sc).astype(o_ref.dtype)


def _vmem_capacity_bytes():
    try:
        info = pltpu.get_tpu_info()
        cap = int(getattr(info, "vmem_capacity_bytes", 0))
        if cap > 0:
            return cap
    except Exception:
        pass
    return 64 << 20  # conservative fallback (v7x per-TC VMEM)


def _auto_tile_b(B):
    # 256-row tiles fill the 256-wide MXUs on v6e/v7x (and 2x128 on v5e) while
    # keeping the f32 temporaries modest; prefer >= 4 grid steps so x/out DMAs
    # overlap compute (>= 2 steps per TensorCore on v7x's two cores).
    for min_steps in (4, 2):
        for tb in (256, 128, 64, 32, 16, 8):
            if B % tb == 0 and B // tb >= min_steps:
                return tb
    return B


def dynamic_residual_block(x, params, *, tile_b=None, approximate_gelu=False):
    """x: (B, D) float32 or bfloat16. params: dict from prepare_params()."""
    B, D = x.shape
    assert D % 128 == 0, "d_hidden must be a multiple of 128 (lane alignment)"
    if tile_b is None:
        tile_b = _auto_tile_b(B)
    assert B % tile_b == 0
    assert tile_b == B or tile_b % 8 == 0

    wx, w2, wc2, vec = params["wx"], params["w2"], params["wc2"], params["vec"]
    assert wx.shape == (3, D, D) and w2.shape == (D, D) and wc2.shape == (D, D)
    assert vec.shape == (_VEC_ROWS, D)

    itemsize = jnp.dtype(x.dtype).itemsize
    resident_bytes = wx.nbytes + w2.nbytes + wc2.nbytes + vec.nbytes
    act_bytes = 2 * 2 * tile_b * D * itemsize       # x + out, double-buffered
    interm_bytes = 8 * tile_b * D * 4               # f32 temporaries headroom
    est = resident_bytes + act_bytes + interm_bytes

    vmem_cap = _vmem_capacity_bytes()
    vmem_budget = vmem_cap - (8 << 20)              # headroom for Mosaic scratch
    if est > vmem_budget:
        # TODO(synk): K/N-tiled variant ("arbitrary" reduction grid axis + f32
        # VMEM accumulator) for D large enough that resident weights overflow
        # this chip's VMEM.
        raise NotImplementedError(
            f"resident weights + activations (~{est >> 20} MiB) exceed the "
            f"VMEM budget ({vmem_budget >> 20} MiB); needs the K/N-tiled path")
    vmem_limit = int(min(max(est * 3 // 2, 32 << 20), vmem_budget))

    # Constant-index operands are single-buffered: a second pipeline buffer is
    # never refilled, so it would be pure wasted VMEM.
    def resident_spec(shape):
        nd = len(shape)
        return pl.BlockSpec(shape, lambda i, _nd=nd: (0,) * _nd,
                            pipeline_mode=pl.Buffered(1))

    kernel = functools.partial(_dyn_res_kernel,
                               approximate_gelu=approximate_gelu)

    out = pl.pallas_call(
        kernel,
        out_shape=jax.ShapeDtypeStruct((B, D), x.dtype),
        grid_spec=pltpu.PrefetchScalarGridSpec(
            num_scalar_prefetch=0,
            grid=(B // tile_b,),
            in_specs=[
                pl.BlockSpec((tile_b, D), lambda i: (i, 0)),   # x
                resident_spec((3, D, D)),                      # [w1|ws|wc1]
                resident_spec((D, D)),                         # w2
                resident_spec((D, D)),                         # wc2
                resident_spec((_VEC_ROWS, D)),                 # packed vectors
            ],
            out_specs=pl.BlockSpec((tile_b, D), lambda i: (i, 0)),
        ),
        compiler_params=pltpu.CompilerParams(
            dimension_semantics=("parallel",),
            vmem_limit_bytes=vmem_limit),
    )(x, wx, w2, wc2, vec)
    return out


# ----------------------------- parameters ---------------------------------

def _xavier_normal(key, d_out, d_in):
    # matches torch.nn.init.xavier_normal_ for a (d_out, d_in) Linear weight
    std = (2.0 / (d_in + d_out)) ** 0.5
    w = jax.random.normal(key, (d_out, d_in), dtype=jnp.float32) * std
    return w.T  # pre-transposed to (d_in, d_out) for y = x @ W


def init_raw_params(key, d_hidden):
    """Unfused, f32, PyTorch-layout-equivalent parameters."""
    ks = jax.random.split(key, 5)
    D = d_hidden
    z = jnp.zeros((1, D), jnp.float32)
    ones = jnp.ones((1, D), jnp.float32)
    return {
        "w1": _xavier_normal(ks[0], D, D), "b1": z, "ln1_g": ones, "ln1_b": z,
        "w2": _xavier_normal(ks[1], D, D), "b2": z,
        "ws": _xavier_normal(ks[2], D, D), "bs": z,
        "wc1": _xavier_normal(ks[3], D, D), "bc1": z,
        "lnc_g": ones, "lnc_b": z,
        "wc2": _xavier_normal(ks[4], D, D), "bc2": z,
    }


def prepare_params(raw):
    """Stack the x-consuming weights, cast MXU weights to bf16, pack vectors."""
    bf16 = jnp.bfloat16
    D = raw["w1"].shape[0]
    wx = jnp.stack([raw["w1"], raw["ws"], raw["wc1"]], axis=0).astype(bf16)
    vec = jnp.concatenate(
        [raw["b1"], raw["bs"], raw["bc1"],
         raw["ln1_g"], raw["ln1_b"], raw["b2"],
         raw["lnc_g"], raw["lnc_b"], raw["bc2"]], axis=0).astype(jnp.float32)
    vec = jnp.concatenate(
        [vec, jnp.zeros((_VEC_ROWS - vec.shape[0], D), jnp.float32)], axis=0)
    return {
        "wx": wx,
        "w2": raw["w2"].astype(bf16),
        "wc2": raw["wc2"].astype(bf16),
        "vec": vec,
    }


# ----------------------------- references ----------------------------------

def _ln(v, g, b, eps=1e-5):
    mu = jnp.mean(v, -1, keepdims=True)
    var = jnp.mean((v - mu) ** 2, -1, keepdims=True)
    return (v - mu) * lax.rsqrt(var + eps) * g + b


def _reference_f32(x, raw):
    """Pure-f32 JAX mirror of the PyTorch forward (eval mode)."""
    gelu = functools.partial(jax.nn.gelu, approximate=False)
    x = x.astype(jnp.float32)
    c = gelu(x @ raw["wc1"] + raw["bc1"])
    c = _ln(c, raw["lnc_g"], raw["lnc_b"])
    c = jax.nn.sigmoid(c @ raw["wc2"] + raw["bc2"])
    h = _ln(x @ raw["w1"] + raw["b1"], raw["ln1_g"], raw["ln1_b"])
    h = gelu(h)
    h = h @ raw["w2"] + raw["b2"]
    sc = x @ raw["ws"] + raw["bs"]
    return h + c * sc


def _reference_bf16(x, raw):
    """JAX mirror with the kernel's bf16 MXU inputs + f32 accumulation."""
    bf16 = jnp.bfloat16

    def mm(a, w):
        return jnp.dot(a.astype(bf16), w.astype(bf16),
                       preferred_element_type=jnp.float32)

    gelu = functools.partial(jax.nn.gelu, approximate=False)
    c = gelu(mm(x, raw["wc1"]) + raw["bc1"])
    c = _ln(c, raw["lnc_g"], raw["lnc_b"])
    c = jax.nn.sigmoid(mm(c, raw["wc2"]) + raw["bc2"])
    h = _ln(mm(x, raw["w1"]) + raw["b1"], raw["ln1_g"], raw["ln1_b"])
    h = gelu(h)
    h = mm(h, raw["w2"]) + raw["b2"]
    sc = mm(x, raw["ws"]) + raw["bs"]
    return h + c * sc


if __name__ == "__main__":
    B, D = 256, 128  # batch, d_hidden (auto tile_b -> 64, 4 pipelined steps)
    key = jax.random.PRNGKey(0)
    kx, kp = jax.random.split(key)
    x = jax.random.normal(kx, (B, D), dtype=jnp.float32)

    raw = init_raw_params(kp, D)
    params = prepare_params(raw)

    # ---- f32-input path ----
    out = jax.block_until_ready(dynamic_residual_block(x, params))
    assert out.shape == (B, D) and out.dtype == x.dtype

    ref_bf16 = _reference_bf16(x, raw)
    ref_f32 = _reference_f32(x, raw)

    err_bf16 = float(jnp.max(jnp.abs(out - ref_bf16)))
    assert jnp.allclose(out, ref_bf16, atol=2e-3, rtol=2e-3), (
        f"mismatch vs bf16-matmul reference (max abs err {err_bf16})")
    err_f32 = float(jnp.max(jnp.abs(out - ref_f32)))
    assert jnp.allclose(out, ref_f32, atol=5e-2, rtol=5e-2), (
        f"mismatch vs f32 PyTorch-equivalent reference (max abs err {err_f32})")

    # ---- bf16 end-to-end path (halves HBM x/out traffic) ----
    x_bf = x.astype(jnp.bfloat16)
    out_bf = jax.block_until_ready(dynamic_residual_block(x_bf, params))
    assert out_bf.shape == (B, D) and out_bf.dtype == jnp.bfloat16
    err_bf_path = float(jnp.max(jnp.abs(out_bf.astype(jnp.float32) - ref_f32)))
    assert jnp.allclose(out_bf.astype(jnp.float32), ref_f32,
                        atol=8e-2, rtol=8e-2), (
        f"bf16-path mismatch vs f32 reference (max abs err {err_bf_path})")

    print("KERNEL_OK")
</pallas_src>

<mosaic_0001>
module attributes {stable_mosaic.version = 11 : i64} {
  func.func @_dyn_res_kernel(%arg0: i32, %arg1: memref<64x128xf32, #tpu.memory_space<vmem>>, %arg2: memref<3x128x128xbf16, #tpu.memory_space<vmem>>, %arg3: memref<128x128xbf16, #tpu.memory_space<vmem>>, %arg4: memref<128x128xbf16, #tpu.memory_space<vmem>>, %arg5: memref<16x128xf32, #tpu.memory_space<vmem>>, %arg6: memref<64x128xf32, #tpu.memory_space<vmem>>) attributes {dimension_semantics = [#tpu.dimension_semantics<parallel>], iteration_bounds = array<i64: 4>, scalar_prefetch = 0 : i64, scratch_operands = 0 : i64, tpu.core_type = #tpu.core_type<tc>, window_params = [{transform_indices = @transform_0, window_bounds = array<i64: 64, 128>}, {pipeline_mode = #tpu.pipeline_mode<synchronous>, transform_indices = @transform_1, window_bounds = array<i64: 3, 128, 128>}, {pipeline_mode = #tpu.pipeline_mode<synchronous>, transform_indices = @transform_2, window_bounds = array<i64: 128, 128>}, {pipeline_mode = #tpu.pipeline_mode<synchronous>, transform_indices = @transform_3, window_bounds = array<i64: 128, 128>}, {pipeline_mode = #tpu.pipeline_mode<synchronous>, transform_indices = @transform_4, window_bounds = array<i64: 16, 128>}, {transform_indices = @transform_5, window_bounds = array<i64: 64, 128>}]} {
    %c0 = arith.constant 0 : index
    %c0_0 = arith.constant 0 : index
    %0 = vector.load %arg5[%c0, %c0_0] : memref<16x128xf32, #tpu.memory_space<vmem>>, vector<16x128xf32>
    %1 = vector.extract_strided_slice %0 {offsets = [0, 0], sizes = [1, 128], strides = [1, 1]} : vector<16x128xf32> to vector<1x128xf32>
    %2 = vector.extract_strided_slice %0 {offsets = [1, 0], sizes = [1, 128], strides = [1, 1]} : vector<16x128xf32> to vector<1x128xf32>
    %3 = vector.extract_strided_slice %0 {offsets = [2, 0], sizes = [1, 128], strides = [1, 1]} : vector<16x128xf32> to vector<1x128xf32>
    %4 = vector.extract_strided_slice %0 {offsets = [3, 0], sizes = [1, 128], strides = [1, 1]} : vector<16x128xf32> to vector<1x128xf32>
    %5 = vector.extract_strided_slice %0 {offsets = [4, 0], sizes = [1, 128], strides = [1, 1]} : vector<16x128xf32> to vector<1x128xf32>
    %6 = vector.extract_strided_slice %0 {offsets = [5, 0], sizes = [1, 128], strides = [1, 1]} : vector<16x128xf32> to vector<1x128xf32>
    %7 = vector.extract_strided_slice %0 {offsets = [6, 0], sizes = [1, 128], strides = [1, 1]} : vector<16x128xf32> to vector<1x128xf32>
    %8 = vector.extract_strided_slice %0 {offsets = [7, 0], sizes = [1, 128], strides = [1, 1]} : vector<16x128xf32> to vector<1x128xf32>
    %9 = vector.extract_strided_slice %0 {offsets = [8, 0], sizes = [1, 128], strides = [1, 1]} : vector<16x128xf32> to vector<1x128xf32>
    %c0_1 = arith.constant 0 : index
    %c0_2 = arith.constant 0 : index
    %10 = vector.load %arg1[%c0_1, %c0_2] : memref<64x128xf32, #tpu.memory_space<vmem>>, vector<64x128xf32>
    %11 = arith.truncf %10 : vector<64x128xf32> to vector<64x128xbf16>
    %c0_3 = arith.constant 0 : index
    %c0_4 = arith.constant 0 : index
    %c0_5 = arith.constant 0 : index
    %12 = vector.load %arg2[%c0_3, %c0_4, %c0_5] : memref<3x128x128xbf16, #tpu.memory_space<vmem>>, vector<1x128x128xbf16>
    %13 = vector.shape_cast %12 : vector<1x128x128xbf16> to vector<128x128xbf16>
    %cst = arith.constant dense<0.000000e+00> : vector<64x128xf32>
    %14 = tpu.matmul %11, %13, %cst {dimension_numbers = #tpu.dot_dimension_numbers<[1], [0], [0], [1], [0, 0, 1, 1], [], []>} : vector<64x128xbf16>, vector<128x128xbf16>, vector<64x128xf32> -> vector<64x128xf32>
    %15 = vector.broadcast %1 : vector<1x128xf32> to vector<64x128xf32>
    %16 = arith.addf %14, %15 : vector<64x128xf32>
    %c1 = arith.constant 1 : index
    %c0_6 = arith.constant 0 : index
    %c0_7 = arith.constant 0 : index
    %17 = vector.load %arg2[%c1, %c0_6, %c0_7] : memref<3x128x128xbf16, #tpu.memory_space<vmem>>, vector<1x128x128xbf16>
    %18 = vector.shape_cast %17 : vector<1x128x128xbf16> to vector<128x128xbf16>
    %cst_8 = arith.constant dense<0.000000e+00> : vector<64x128xf32>
    %19 = tpu.matmul %11, %18, %cst_8 {dimension_numbers = #tpu.dot_dimension_numbers<[1], [0], [0], [1], [0, 0, 1, 1], [], []>} : vector<64x128xbf16>, vector<128x128xbf16>, vector<64x128xf32> -> vector<64x128xf32>
    %20 = vector.broadcast %2 : vector<1x128xf32> to vector<64x128xf32>
    %21 = arith.addf %19, %20 : vector<64x128xf32>
    %c2 = arith.constant 2 : index
    %c0_9 = arith.constant 0 : index
    %c0_10 = arith.constant 0 : index
    %22 = vector.load %arg2[%c2, %c0_9, %c0_10] : memref<3x128x128xbf16, #tpu.memory_space<vmem>>, vector<1x128x128xbf16>
    %23 = vector.shape_cast %22 : vector<1x128x128xbf16> to vector<128x128xbf16>
    %cst_11 = arith.constant dense<0.000000e+00> : vector<64x128xf32>
    %24 = tpu.matmul %11, %23, %cst_11 {dimension_numbers = #tpu.dot_dimension_numbers<[1], [0], [0], [1], [0, 0, 1, 1], [], []>} : vector<64x128xbf16>, vector<128x128xbf16>, vector<64x128xf32> -> vector<64x128xf32>
    %25 = vector.broadcast %3 : vector<1x128xf32> to vector<64x128xf32>
    %26 = arith.addf %24, %25 : vector<64x128xf32>
    %cst_12 = arith.constant 5.000000e-01 : f32
    %27 = vector.broadcast %cst_12 : f32 to vector<64x128xf32>
    %28 = arith.mulf %27, %26 : vector<64x128xf32>
    %cst_13 = arith.constant 0.707106769 : f32
    %29 = vector.broadcast %cst_13 : f32 to vector<64x128xf32>
    %30 = arith.mulf %26, %29 : vector<64x128xf32>
    %31 = math.erf %30 : vector<64x128xf32>
    %cst_14 = arith.constant 1.000000e+00 : f32
    %32 = vector.broadcast %cst_14 : f32 to vector<64x128xf32>
    %33 = arith.addf %32, %31 : vector<64x128xf32>
    %34 = arith.mulf %28, %33 : vector<64x128xf32>
    %cst_15 = arith.constant dense<0.000000e+00> : vector<64xf32>
    %35 = vector.multi_reduction <add>, %34, %cst_15 [1] : vector<64x128xf32> to vector<64xf32>
    %36 = vector.shape_cast %35 : vector<64xf32> to vector<64x1xf32>
    %cst_16 = arith.constant 1.280000e+02 : f32
    %37 = vector.broadcast %cst_16 : f32 to vector<64x1xf32>
    %38 = arith.divf %36, %37 : vector<64x1xf32>
    %39 = vector.broadcast %38 : vector<64x1xf32> to vector<64x128xf32>
    %40 = arith.subf %34, %39 : vector<64x128xf32>
    %41 = vector.broadcast %38 : vector<64x1xf32> to vector<64x128xf32>
    %42 = arith.subf %34, %41 : vector<64x128xf32>
    %43 = arith.mulf %40, %42 : vector<64x128xf32>
    %cst_17 = arith.constant dense<0.000000e+00> : vector<64xf32>
    %44 = vector.multi_reduction <add>, %43, %cst_17 [1] : vector<64x128xf32> to vector<64xf32>
    %45 = vector.shape_cast %44 : vector<64xf32> to vector<64x1xf32>
    %cst_18 = arith.constant 1.280000e+02 : f32
    %46 = vector.broadcast %cst_18 : f32 to vector<64x1xf32>
    %47 = arith.divf %45, %46 : vector<64x1xf32>
    %48 = vector.broadcast %38 : vector<64x1xf32> to vector<64x128xf32>
    %49 = arith.subf %34, %48 : vector<64x128xf32>
    %cst_19 = arith.constant 9.99999974E-6 : f32
    %50 = vector.broadcast %cst_19 : f32 to vector<64x1xf32>
    %51 = arith.addf %47, %50 : vector<64x1xf32>
    %52 = math.rsqrt %51 : vector<64x1xf32>
    %53 = vector.broadcast %52 : vector<64x1xf32> to vector<64x128xf32>
    %54 = arith.mulf %49, %53 : vector<64x128xf32>
    %55 = vector.broadcast %7 : vector<1x128xf32> to vector<64x128xf32>
    %56 = arith.mulf %54, %55 : vector<64x128xf32>
    %57 = vector.broadcast %8 : vector<1x128xf32> to vector<64x128xf32>
    %58 = arith.addf %56, %57 : vector<64x128xf32>
    %59 = arith.truncf %58 : vector<64x128xf32> to vector<64x128xbf16>
    %c0_20 = arith.constant 0 : index
    %c0_21 = arith.constant 0 : index
    %60 = vector.load %arg4[%c0_20, %c0_21] : memref<128x128xbf16, #tpu.memory_space<vmem>>, vector<128x128xbf16>
    %cst_22 = arith.constant dense<0.000000e+00> : vector<64x128xf32>
    %61 = tpu.matmul %59, %60, %cst_22 {dimension_numbers = #tpu.dot_dimension_numbers<[1], [0], [0], [1], [0, 0, 1, 1], [], []>} : vector<64x128xbf16>, vector<128x128xbf16>, vector<64x128xf32> -> vector<64x128xf32>
    %62 = vector.broadcast %9 : vector<1x128xf32> to vector<64x128xf32>
    %63 = arith.addf %61, %62 : vector<64x128xf32>
    %64 = arith.negf %63 : vector<64x128xf32>
    %65 = math.exp %64 : vector<64x128xf32>
    %cst_23 = arith.constant 1.000000e+00 : f32
    %66 = vector.broadcast %cst_23 : f32 to vector<64x128xf32>
    %67 = arith.addf %66, %65 : vector<64x128xf32>
    %68 = arith.divf %66, %67 : vector<64x128xf32>
    %cst_24 = arith.constant dense<0.000000e+00> : vector<64xf32>
    %69 = vector.multi_reduction <add>, %16, %cst_24 [1] : vector<64x128xf32> to vector<64xf32>
    %70 = vector.shape_cast %69 : vector<64xf32> to vector<64x1xf32>
    %cst_25 = arith.constant 1.280000e+02 : f32
    %71 = vector.broadcast %cst_25 : f32 to vector<64x1xf32>
    %72 = arith.divf %70, %71 : vector<64x1xf32>
    %73 = vector.broadcast %72 : vector<64x1xf32> to vector<64x128xf32>
    %74 = arith.subf %16, %73 : vector<64x128xf32>
    %75 = vector.broadcast %72 : vector<64x1xf32> to vector<64x128xf32>
    %76 = arith.subf %16, %75 : vector<64x128xf32>
    %77 = arith.mulf %74, %76 : vector<64x128xf32>
    %cst_26 = arith.constant dense<0.000000e+00> : vector<64xf32>
    %78 = vector.multi_reduction <add>, %77, %cst_26 [1] : vector<64x128xf32> to vector<64xf32>
    %79 = vector.shape_cast %78 : vector<64xf32> to vector<64x1xf32>
    %cst_27 = arith.constant 1.280000e+02 : f32
    %80 = vector.broadcast %cst_27 : f32 to vector<64x1xf32>
    %81 = arith.divf %79, %80 : vector<64x1xf32>
    %82 = vector.broadcast %72 : vector<64x1xf32> to vector<64x128xf32>
    %83 = arith.subf %16, %82 : vector<64x128xf32>
    %cst_28 = arith.constant 9.99999974E-6 : f32
    %84 = vector.broadcast %cst_28 : f32 to vector<64x1xf32>
    %85 = arith.addf %81, %84 : vector<64x1xf32>
    %86 = math.rsqrt %85 : vector<64x1xf32>
    %87 = vector.broadcast %86 : vector<64x1xf32> to vector<64x128xf32>
    %88 = arith.mulf %83, %87 : vector<64x128xf32>
    %89 = vector.broadcast %4 : vector<1x128xf32> to vector<64x128xf32>
    %90 = arith.mulf %88, %89 : vector<64x128xf32>
    %91 = vector.broadcast %5 : vector<1x128xf32> to vector<64x128xf32>
    %92 = arith.addf %90, %91 : vector<64x128xf32>
    %cst_29 = arith.constant 5.000000e-01 : f32
    %93 = vector.broadcast %cst_29 : f32 to vector<64x128xf32>
    %94 = arith.mulf %93, %92 : vector<64x128xf32>
    %cst_30 = arith.constant 0.707106769 : f32
    %95 = vector.broadcast %cst_30 : f32 to vector<64x128xf32>
    %96 = arith.mulf %92, %95 : vector<64x128xf32>
    %97 = math.erf %96 : vector<64x128xf32>
    %cst_31 = arith.constant 1.000000e+00 : f32
    %98 = vector.broadcast %cst_31 : f32 to vector<64x128xf32>
    %99 = arith.addf %98, %97 : vector<64x128xf32>
    %100 = arith.mulf %94, %99 : vector<64x128xf32>
    %101 = arith.truncf %100 : vector<64x128xf32> to vector<64x128xbf16>
    %c0_32 = arith.constant 0 : index
    %c0_33 = arith.constant 0 : index
    %102 = vector.load %arg3[%c0_32, %c0_33] : memref<128x128xbf16, #tpu.memory_space<vmem>>, vector<128x128xbf16>
    %cst_34 = arith.constant dense<0.000000e+00> : vector<64x128xf32>
    %103 = tpu.matmul %101, %102, %cst_34 {dimension_numbers = #tpu.dot_dimension_numbers<[1], [0], [0], [1], [0, 0, 1, 1], [], []>} : vector<64x128xbf16>, vector<128x128xbf16>, vector<64x128xf32> -> vector<64x128xf32>
    %104 = vector.broadcast %6 : vector<1x128xf32> to vector<64x128xf32>
    %105 = arith.addf %103, %104 : vector<64x128xf32>
    %106 = arith.mulf %68, %21 : vector<64x128xf32>
    %107 = arith.addf %105, %106 : vector<64x128xf32>
    %c0_35 = arith.constant 0 : index
    %c0_36 = arith.constant 0 : index
    %108 = vector.load %arg6[%c0_35, %c0_36] : memref<64x128xf32, #tpu.memory_space<vmem>>, vector<64x128xf32>
    tpu.vector_store %arg6[%c0_35, %c0_36], %107 {strides = array<i32>} : memref<64x128xf32, #tpu.memory_space<vmem>>, vector<64x128xf32>,
    return
  }
  func.func @transform_0(%arg0: i32) -> (i32, i32) {
    %c0_i32 = arith.constant 0 : i32
    %c0_i32_0 = arith.constant 0 : i32
    return %arg0, %c0_i32 : i32, i32
  }
  func.func @transform_1(%arg0: i32) -> (i32, i32, i32) {
    %c0_i32 = arith.constant 0 : i32
    %c0_i32_0 = arith.constant 0 : i32
    %c0_i32_1 = arith.constant 0 : i32
    %c0_i32_2 = arith.constant 0 : i32
    return %c0_i32, %c0_i32_0, %c0_i32_1 : i32, i32, i32
  }
  func.func @transform_2(%arg0: i32) -> (i32, i32) {
    %c0_i32 = arith.constant 0 : i32
    %c0_i32_0 = arith.constant 0 : i32
    %c0_i32_1 = arith.constant 0 : i32
    return %c0_i32, %c0_i32_0 : i32, i32
  }
  func.func @transform_3(%arg0: i32) -> (i32, i32) {
    %c0_i32 = arith.constant 0 : i32
    %c0_i32_0 = arith.constant 0 : i32
    %c0_i32_1 = arith.constant 0 : i32
    return %c0_i32, %c0_i32_0 : i32, i32
  }
  func.func @transform_4(%arg0: i32) -> (i32, i32) {
    %c0_i32 = arith.constant 0 : i32
    %c0_i32_0 = arith.constant 0 : i32
    %c0_i32_1 = arith.constant 0 : i32
    return %c0_i32, %c0_i32_0 : i32, i32
  }
  func.func @transform_5(%arg0: i32) -> (i32, i32) {
    %c0_i32 = arith.constant 0 : i32
    %c0_i32_0 = arith.constant 0 : i32
    return %arg0, %c0_i32 : i32, i32
  }
}

</mosaic_0001>

<llo_original>
// kernel: tpu_custom_call.1
$region0: #{tpu_custom_call.1}
  #allocation0 [shape = 'u32[]', space=smem, size = 0x4, offset = 0x4, fixed_abs, tag = 'smem constant byte address 0x4 - core index']
  #allocation1 [shape = 'u32[72,128]{1,0:T(1,128)}', space=vmem, size = 0x9000, scoped, tag = 'internal scratch']
  %s0 = inlined_call_operand.hbm [shape: f32[256,128], index: 0, kind: input, shape index: {}]
  %s1 = inlined_call_operand.hbm [shape: bf16[3,128,128], index: 1, kind: input, shape index: {}]
  %s2 = inlined_call_operand.hbm [shape: bf16[128,128], index: 2, kind: input, shape index: {}]
  %s3 = inlined_call_operand.hbm [shape: bf16[128,128], index: 3, kind: input, shape index: {}]
  %s4 = inlined_call_operand.hbm [shape: f32[16,128], index: 4, kind: input, shape index: {}]
  %s5 = inlined_call_operand.hbm [shape: f32[256,128], index: 5, kind: output, shape index: {}]
  %s6 = sld [smem:[#allocation0]]
  $region73: #{tpu_custom_call.1} parent=0
    _
  %s8 = ssub.s32 1, %s6
  %s9 = scalar_select 0, %s8, %s6
  $region1: #{tpu_custom_call.1} parent=0
    #allocation2 [shape = 'u8[65536]{0}', space=vmem, size = 0x10000, scoped, tag = 'input window, operand 0']
    #allocation3 [shape = 's32[2]{0}', space=sflag, size = 0x8, scoped, tag = 'scoped memory for tpu_custom_call.1']
    #allocation4 [shape = 's32[2]{0}', space=sflag, size = 0x8, scoped, tag = 'scoped memory for tpu_custom_call.1']
    #allocation5 [shape = 'u8[98304]{0}', space=vmem, size = 0x18000, scoped, tag = 'input window, operand 1, single buffered']
    #allocation6 [shape = 's32[1]{0}', space=sflag, size = 0x4, scoped, tag = 'scoped memory for tpu_custom_call.1']
    #allocation7 [shape = 'u8[32768]{0}', space=vmem, size = 0x8000, scoped, tag = 'input window, operand 2, single buffered']
    #allocation8 [shape = 'u8[32768]{0}', space=vmem, size = 0x8000, scoped, tag = 'input window, operand 3, single buffered']
    #allocation9 [shape = 's32[1]{0}', space=sflag, size = 0x4, scoped, tag = 'scoped memory for tpu_custom_call.1']
    #allocation10 [shape = 'u8[8192]{0}', space=vmem, size = 0x2000, scoped, tag = 'input window, operand 4, single buffered']
    #allocation11 [shape = 'u8[65536]{0}', space=vmem, size = 0x10000, scoped, tag = 'output window, operand 0']
    %10 = vsyncpa [#allocation3], 0
    %s11 = scalar_lea.sflag [#allocation3], 1
    %12 = vsyncpa %s11, 0
    %13 = vsyncpa [#allocation6], 0
    %14 = vsyncpa [#allocation9], 0
    %15 = vsyncpa [#allocation4], 0
    %s16 = scalar_lea.sflag [#allocation4], 1
    %17 = vsyncpa %s16, 0
    loop: start=0, step=1, limit=6
    $region2: #{tpu_custom_call.1} parent=1 // loop_pre_header
      _
    $region3: #{tpu_custom_call.1} parent=1 // loop_header
      %s19 = sphi 0, %s23
      %p20 = scmp.ge.s32.totalorder %s19, 6
      %s29 = sphi 0, %s31
      %s32 = sphi 0, %s29
      %s33 = sphi 0, %s32
      %s49 = sphi 0, %s33
      %s53 = sphi 0, %s53
      %s55 = sphi 0, %s53
      %s56 = sphi 0, %s55
      %s70 = sphi 0, %s56
      %s74 = sphi 0, %s74
      %s76 = sphi 0, %s74
      %s77 = sphi 0, %s76
      %s91 = sphi 0, %s77
      %s95 = sphi 0, %s95
      %s97 = sphi 0, %s95
      %s98 = sphi 0, %s97
      %s112 = sphi 0, %s98
      %s116 = sphi 0, %s116
      %s118 = sphi 0, %s116
      %s119 = sphi 0, %s118
      %s133 = sphi 0, %s119
      %s139 = sphi 0, %s141
      %s142 = sphi 0, %s139
      %s143 = sphi 0, %s142
      %s159 = sphi 0, %s143
    $region4: #{tpu_custom_call.1} parent=1 // loop_header_branch
      %22 = sbr.rel (%p20) target = $region8
    $region5: #{tpu_custom_call.1} parent=1 // loop_body
      %s24 = ssub.s32 %s19, 1
      %s25 = ssub.s32 %s19, 2
      %s26 = sadd.s32 %s19, 1
      %s27 = ssub.s32 %s19, %s26
      %p28 = scmp.eq.s32.totalorder %s27, 0
      %s30 = sadd.s32 %s29, 1
      %s31 = scalar_select %p28, %s29, %s30
      %p34 = pneg %p28
      %p35 = scmp.eq.s32.totalorder %s19, 3
      %p36 = por %p34, %p35
      %p37 = scmp.ne.s32.totalorder %s29, %s32
      %p38 = scmp.eq.s32.totalorder %s19, 0
      %p39 = por %p37, %p38
      %p40 = scmp.ne.s32.totalorder %s29, %s32
      %p41 = scmp.eq.s32.totalorder %s24, 3
      %p42 = por %p40, %p41
      %p43 = scmp.ne.s32.totalorder %s32, %s33
      %p44 = scmp.eq.s32.totalorder %s24, 0
      %p45 = por %p43, %p44
      %p46 = scmp.ne.s32.totalorder %s32, %s33
      %p47 = scmp.eq.s32.totalorder %s25, 3
      %p48 = por %p46, %p47
      %p50 = scmp.ne.s32.totalorder %s33, %s49
      %p51 = scmp.eq.s32.totalorder %s25, 0
      %p52 = por %p50, %p51
      %s54 = sadd.s32 %s53, 1
      %p57 = scmp.eq.s32.totalorder %s19, 3
      %p58 = scmp.ne.s32.totalorder %s53, %s55
      %p59 = scmp.eq.s32.totalorder %s19, 0
      %p60 = por %p58, %p59
      %p61 = scmp.ne.s32.totalorder %s53, %s55
      %p62 = scmp.eq.s32.totalorder %s24, 3
      %p63 = por %p61, %p62
      %p64 = scmp.ne.s32.totalorder %s55, %s56
      %p65 = scmp.eq.s32.totalorder %s24, 0
      %p66 = por %p64, %p65
      %p67 = scmp.ne.s32.totalorder %s55, %s56
      %p68 = scmp.eq.s32.totalorder %s25, 3
      %p69 = por %p67, %p68
      %p71 = scmp.ne.s32.totalorder %s56, %s70
      %p72 = scmp.eq.s32.totalorder %s25, 0
      %p73 = por %p71, %p72
      %s75 = sadd.s32 %s74, 1
      %p78 = scmp.eq.s32.totalorder %s19, 3
      %p79 = scmp.ne.s32.totalorder %s74, %s76
      %p80 = scmp.eq.s32.totalorder %s19, 0
      %p81 = por %p79, %p80
      %p82 = scmp.ne.s32.totalorder %s74, %s76
      %p83 = scmp.eq.s32.totalorder %s24, 3
      %p84 = por %p82, %p83
      %p85 = scmp.ne.s32.totalorder %s76, %s77
      %p86 = scmp.eq.s32.totalorder %s24, 0
      %p87 = por %p85, %p86
      %p88 = scmp.ne.s32.totalorder %s76, %s77
      %p89 = scmp.eq.s32.totalorder %s25, 3
      %p90 = por %p88, %p89
      %p92 = scmp.ne.s32.totalorder %s77, %s91
      %p93 = scmp.eq.s32.totalorder %s25, 0
      %p94 = por %p92, %p93
      %s96 = sadd.s32 %s95, 1
      %p99 = scmp.eq.s32.totalorder %s19, 3
      %p100 = scmp.ne.s32.totalorder %s95, %s97
      %p101 = scmp.eq.s32.totalorder %s19, 0
      %p102 = por %p100, %p101
      %p103 = scmp.ne.s32.totalorder %s95, %s97
      %p104 = scmp.eq.s32.totalorder %s24, 3
      %p105 = por %p103, %p104
      %p106 = scmp.ne.s32.totalorder %s97, %s98
      %p107 = scmp.eq.s32.totalorder %s24, 0
      %p108 = por %p106, %p107
      %p109 = scmp.ne.s32.totalorder %s97, %s98
      %p110 = scmp.eq.s32.totalorder %s25, 3
      %p111 = por %p109, %p110
      %p113 = scmp.ne.s32.totalorder %s98, %s112
      %p114 = scmp.eq.s32.totalorder %s25, 0
      %p115 = por %p113, %p114
      %s117 = sadd.s32 %s116, 1
      %p120 = scmp.eq.s32.totalorder %s19, 3
      %p121 = scmp.ne.s32.totalorder %s116, %s118
      %p122 = scmp.eq.s32.totalorder %s19, 0
      %p123 = por %p121, %p122
      %p124 = scmp.ne.s32.totalorder %s116, %s118
      %p125 = scmp.eq.s32.totalorder %s24, 3
      %p126 = por %p124, %p125
      %p127 = scmp.ne.s32.totalorder %s118, %s119
      %p128 = scmp.eq.s32.totalorder %s24, 0
      %p129 = por %p127, %p128
      %p130 = scmp.ne.s32.totalorder %s118, %s119
      %p131 = scmp.eq.s32.totalorder %s25, 3
      %p132 = por %p130, %p131
      %p134 = scmp.ne.s32.totalorder %s119, %s133
      %p135 = scmp.eq.s32.totalorder %s25, 0
      %p136 = por %p134, %p135
      %s137 = ssub.s32 %s19, %s26
      %p138 = scmp.eq.s32.totalorder %s137, 0
      %s140 = sadd.s32 %s139, 1
      %s141 = scalar_select %p138, %s139, %s140
      %p144 = pneg %p138
      %p145 = scmp.eq.s32.totalorder %s19, 3
      %p146 = por %p144, %p145
      %p147 = scmp.ne.s32.totalorder %s139, %s142
      %p148 = scmp.eq.s32.totalorder %s19, 0
      %p149 = por %p147, %p148
      %p150 = scmp.ne.s32.totalorder %s139, %s142
      %p151 = scmp.eq.s32.totalorder %s24, 3
      %p152 = por %p150, %p151
      %p153 = scmp.ne.s32.totalorder %s142, %s143
      %p154 = scmp.eq.s32.totalorder %s24, 0
      %p155 = por %p153, %p154
      %p156 = scmp.ne.s32.totalorder %s142, %s143
      %p157 = scmp.eq.s32.totalorder %s25, 3
      %p158 = por %p156, %p157
      %p160 = scmp.ne.s32.totalorder %s143, %s159
      %p161 = scmp.eq.s32.totalorder %s25, 0
      %p162 = por %p160, %p161
      %p163 = scmp.le.s32.totalorder 1, %s19
      %p164 = scmp.lt.s32.totalorder %s19, 5
      %p165 = pnand %p163, %p164
      %p166 = pneg %p165
      // Predicated region
      $region9: #{tpu_custom_call.1} parent=5 // pred_check
        _
      $region10: #{tpu_custom_call.1} parent=5 // pred_check_branch
        %168 = sbr.rel (%p165) target = $region12
      $region11: #{tpu_custom_call.1} parent=5 // pred_region
        %s169 = ssub.s32 %s19, 1
        // Predicated region
        $region13: #{tpu_custom_call.1} parent=11 // pred_check
          %p170 = pneg %p66
        $region14: #{tpu_custom_call.1} parent=11 // pred_check_branch
          %172 = sbr.rel (%p170) target = $region16
        $region15: #{tpu_custom_call.1} parent=11 // pred_region
          %174 = vsyncadd [#allocation6], 0
          %s175 = sshll.u32 %s1, 4
          %s176 = int_to_ptr.hbm [resolvable:$true] %s175
          %s177 = sshll.u32 [#allocation5], 4
          %s178 = int_to_ptr.vmem [resolvable:$true] %s177
          %183 = dma.hbm_to_vmem [thread:$0]  %s176, 3072, %s178, [#allocation6], 64, 64, 4
        $region16: #{tpu_custom_call.1} parent=11 // pred_fallthru
          _
        // Predicated region
        $region17: #{tpu_custom_call.1} parent=11 // pred_check
          %p184 = pneg %p87
        $region18: #{tpu_custom_call.1} parent=11 // pred_check_branch
          %186 = sbr.rel (%p184) target = $region20
        $region19: #{tpu_custom_call.1} parent=11 // pred_region
          %188 = vsyncadd [#allocation6], 0
          %s189 = sshll.u32 %s2, 4
          %s190 = int_to_ptr.hbm [resolvable:$true] %s189
          %s191 = sshll.u32 [#allocation7], 4
          %s192 = int_to_ptr.vmem [resolvable:$true] %s191
          %197 = dma.hbm_to_vmem [thread:$0]  %s190, 1024, %s192, [#allocation6], 64, 64, 4
        $region20: #{tpu_custom_call.1} parent=11 // pred_fallthru
          _
        // Predicated region
        $region21: #{tpu_custom_call.1} parent=11 // pred_check
          %p198 = pneg %p108
        $region22: #{tpu_custom_call.1} parent=11 // pred_check_branch
          %200 = sbr.rel (%p198) target = $region24
        $region23: #{tpu_custom_call.1} parent=11 // pred_region
          %202 = vsyncadd [#allocation9], 0
          %s203 = sshll.u32 %s3, 4
          %s204 = int_to_ptr.hbm [resolvable:$true] %s203
          %s205 = sshll.u32 [#allocation8], 4
          %s206 = int_to_ptr.vmem [resolvable:$true] %s205
          %211 = dma.hbm_to_vmem [thread:$0]  %s204, 1024, %s206, [#allocation9], 64, 64, 4
        $region24: #{tpu_custom_call.1} parent=11 // pred_fallthru
          _
        // Predicated region
        $region25: #{tpu_custom_call.1} parent=11 // pred_check
          %p212 = pneg %p129
        $region26: #{tpu_custom_call.1} parent=11 // pred_check_branch
          %214 = sbr.rel (%p212) target = $region28
        $region27: #{tpu_custom_call.1} parent=11 // pred_region
          %216 = vsyncadd [#allocation9], 0
          %s217 = sshll.u32 %s4, 4
          %s218 = int_to_ptr.hbm [resolvable:$true] %s217
          %s219 = sshll.u32 [#allocation10], 4
          %s220 = int_to_ptr.vmem [resolvable:$true] %s219
          %225 = dma.hbm_to_vmem [thread:$0]  %s218, 256, %s220, [#allocation9], 128, 128, 8
        $region28: #{tpu_custom_call.1} parent=11 // pred_fallthru
          _
      $region12: #{tpu_custom_call.1} parent=5 // pred_fallthru
        _
      %p226 = scmp.lt.s32.totalorder %s19, 4
      // Predicated region
      $region29: #{tpu_custom_call.1} parent=5 // pred_check
        %p227 = pneg %p226
      $region30: #{tpu_custom_call.1} parent=5 // pred_check_branch
        %229 = sbr.rel (%p227) target = $region32
      $region31: #{tpu_custom_call.1} parent=5 // pred_region
        // Predicated region
        $region33: #{tpu_custom_call.1} parent=31 // pred_check
          %p230 = pneg %p39
        $region34: #{tpu_custom_call.1} parent=31 // pred_check_branch
          %232 = sbr.rel (%p230) target = $region36
        $region35: #{tpu_custom_call.1} parent=31 // pred_region
          %s233 = sand.u32 %s29, 1
          %s234 = scalar_lea.sflag [#allocation3], %s233
          %s235 = sand.u32 %s29, 1
          %s236 = smul.addr %s235, 64
          %s237 = scalar_lea.vmem [#allocation2], %s236
          %s238 = smul.u32 8, %s19
          %240 = vsyncadd %s234, 0
          %s241 = smul.addr %s238, 8
          %s242 = scalar_lea.hbm %s0, %s241
          %s243 = sshll.u32 %s242, 4
          %s244 = int_to_ptr.hbm [resolvable:$true] %s243
          %s245 = sshll.u32 %s237, 4
          %s246 = int_to_ptr.vmem [resolvable:$true] %s245
          %251 = dma.hbm_to_vmem [thread:$0]  %s244, 1024, %s246, %s234, 128, 128, 8
        $region36: #{tpu_custom_call.1} parent=31 // pred_fallthru
          _
      $region32: #{tpu_custom_call.1} parent=5 // pred_fallthru
        _
      %p252 = scmp.le.s32.totalorder 1, %s19
      %p253 = scmp.lt.s32.totalorder %s19, 5
      %p254 = pnand %p252, %p253
      %p255 = pneg %p254
      // Predicated region
      $region37: #{tpu_custom_call.1} parent=5 // pred_check
        _
      $region38: #{tpu_custom_call.1} parent=5 // pred_check_branch
        %257 = sbr.rel (%p254) target = $region40
      $region39: #{tpu_custom_call.1} parent=5 // pred_region
        %s258 = ssub.s32 %s19, 1
        %s259 = sand.u32 %s32, 1
        %s260 = scalar_lea.sflag [#allocation3], %s259
        %s261 = sand.u32 %s32, 1
        %s262 = smul.addr %s261, 64
        %s263 = scalar_lea.vmem [#allocation2], %s262
        // Predicated region
        $region41: #{tpu_custom_call.1} parent=39 // pred_check
          %p264 = pneg %p45
        $region42: #{tpu_custom_call.1} parent=39 // pred_check_branch
          %266 = sbr.rel (%p264) target = $region44
        $region43: #{tpu_custom_call.1} parent=39 // pred_region
          %268 = dma.done %s260, 1024
        $region44: #{tpu_custom_call.1} parent=39 // pred_fallthru
          _
        // Predicated region
        $region45: #{tpu_custom_call.1} parent=39 // pred_check
          %p269 = pneg %p66
        $region46: #{tpu_custom_call.1} parent=39 // pred_check_branch
          %271 = sbr.rel (%p269) target = $region48
        $region47: #{tpu_custom_call.1} parent=39 // pred_region
          %273 = dma.done [#allocation6], 3072
        $region48: #{tpu_custom_call.1} parent=39 // pred_fallthru
          _
        // Predicated region
        $region49: #{tpu_custom_call.1} parent=39 // pred_check
          %p274 = pneg %p87
        $region50: #{tpu_custom_call.1} parent=39 // pred_check_branch
          %276 = sbr.rel (%p274) target = $region52
        $region51: #{tpu_custom_call.1} parent=39 // pred_region
          %278 = dma.done [#allocation6], 1024
        $region52: #{tpu_custom_call.1} parent=39 // pred_fallthru
          _
        // Predicated region
        $region53: #{tpu_custom_call.1} parent=39 // pred_check
          %p279 = pneg %p108
        $region54: #{tpu_custom_call.1} parent=39 // pred_check_branch
          %281 = sbr.rel (%p279) target = $region56
        $region55: #{tpu_custom_call.1} parent=39 // pred_region
          %283 = dma.done [#allocation9], 1024
        $region56: #{tpu_custom_call.1} parent=39 // pred_fallthru
          _
        // Predicated region
        $region57: #{tpu_custom_call.1} parent=39 // pred_check
          %p284 = pneg %p129
        $region58: #{tpu_custom_call.1} parent=39 // pred_check_branch
          %286 = sbr.rel (%p284) target = $region60
        $region59: #{tpu_custom_call.1} parent=39 // pred_region
          %288 = dma.done [#allocation9], 256
        $region60: #{tpu_custom_call.1} parent=39 // pred_fallthru
          _
        %s289 = sand.u32 %s32, 1
        %s290 = scalar_lea.sflag [#allocation3], %s289
        %s291 = sand.u32 %s32, 1
        %s292 = smul.addr %s291, 64
        %s293 = scalar_lea.vmem [#allocation2], %s292
        %p294 = pneg %p45
        %p295 = pneg %p42
        %p296 = pneg %p66
        %p297 = pneg %p63
        %p298 = pneg %p87
        %p299 = pneg %p84
        %p300 = pneg %p108
        %p301 = pneg %p105
        %p302 = pneg %p129
        %p303 = pneg %p126
        %p304 = pneg %p155
        %p305 = pneg %p152
        %s306 = sand.u32 %s142, 1
        %s307 = scalar_lea.sflag [#allocation4], %s306
        %s308 = sand.u32 %s142, 1
        %s309 = smul.addr %s308, 64
        %s310 = scalar_lea.vmem [#allocation11], %s309
        %s311 = smul.u32 8, %s24
        %s312 = smul.u32 8, %s24
        %v313 = vld [vmem:[#allocation10] sm:$0xff]
        %v314 = vld [vmem:[#allocation10 + $0x8] sm:$0xff]
        %v315 = vld [vmem:[%s263] sm:$0xff]
        %v316 = vld [vmem:[%s263 + $0x8] sm:$0xff]
        %v317 = vld [vmem:[%s263 + $0x10] sm:$0xff]
        %v318 = vld [vmem:[%s263 + $0x18] sm:$0xff]
        %v319 = vld [vmem:[%s263 + $0x20] sm:$0xff]
        %v320 = vld [vmem:[%s263 + $0x28] sm:$0xff]
        %v321 = vld [vmem:[%s263 + $0x30] sm:$0xff]
        %v322 = vld [vmem:[%s263 + $0x38] sm:$0xff]
        %v323 = vpack.c.bf16 %v316, %v315
        %v324 = vpack.c.bf16 %v318, %v317
        %v325 = vpack.c.bf16 %v320, %v319
        %v326 = vpack.c.bf16 %v322, %v321
        %v327 = vld [vmem:[#allocation5] sm:$0xf]
        %v328 = vld [vmem:[#allocation5 + $0x4] sm:$0xf]
        %v329 = vld [vmem:[#allocation5 + $0x8] sm:$0xf]
        %v330 = vld [vmem:[#allocation5 + $0xc] sm:$0xf]
        %v331 = vld [vmem:[#allocation5 + $0x10] sm:$0xf]
        %v332 = vld [vmem:[#allocation5 + $0x14] sm:$0xf]
        %v333 = vld [vmem:[#allocation5 + $0x18] sm:$0xf]
        %v334 = vld [vmem:[#allocation5 + $0x1c] sm:$0xf]
        %v335 = vld [vmem:[#allocation5 + $0x20] sm:$0xf]
        %v336 = vld [vmem:[#allocation5 + $0x24] sm:$0xf]
        %v337 = vld [vmem:[#allocation5 + $0x28] sm:$0xf]
        %v338 = vld [vmem:[#allocation5 + $0x2c] sm:$0xf]
        %v339 = vld [vmem:[#allocation5 + $0x30] sm:$0xf]
        %v340 = vld [vmem:[#allocation5 + $0x34] sm:$0xf]
        %v341 = vld [vmem:[#allocation5 + $0x38] sm:$0xf]
        %v342 = vld [vmem:[#allocation5 + $0x3c] sm:$0xf]
        %v343 = vperm.slane %v313, 0
        %v360 = vunpack.c.l.b16 %v327
        %v361 = vunpack.c.l.b16 %v328
        %v362 = vunpack.c.l.b16 %v329
        %v363 = vunpack.c.l.b16 %v330
        %v364 = vunpack.c.l.b16 %v331
        %v365 = vunpack.c.l.b16 %v332
        %v366 = vunpack.c.l.b16 %v333
        %v367 = vunpack.c.l.b16 %v334
        %v368 = vunpack.c.l.b16 %v335
        %v369 = vunpack.c.l.b16 %v336
        %v370 = vunpack.c.l.b16 %v337
        %v371 = vunpack.c.l.b16 %v338
        %v372 = vunpack.c.l.b16 %v339
        %v373 = vunpack.c.l.b16 %v340
        %v374 = vunpack.c.l.b16 %v341
        %v375 = vunpack.c.l.b16 %v342
        %v376 = vpack.c.b16 %v361, %v360
        %v377 = vpack.c.b16 %v363, %v362
        %v378 = vpack.c.b16 %v365, %v364
        %v379 = vpack.c.b16 %v367, %v366
        %v380 = vpack.c.b16 %v369, %v368
        %v381 = vpack.c.b16 %v371, %v370
        %v382 = vpack.c.b16 %v373, %v372
        %v383 = vpack.c.b16 %v375, %v374
        %392 = vmatpush.bf16.msra.mxu0 %v383
        %393 = vmatpush.bf16.msra.mxu0 %v382
        %394 = vmatpush.bf16.msra.mxu0 %v381
        %395 = vmatpush.bf16.msra.mxu0 %v380
        %396 = vmatpush.bf16.msra.mxu0 %v379
        %397 = vmatpush.bf16.msra.mxu0 %v378
        %398 = vmatpush.bf16.msra.mxu0 %v377
        %399 = vmatpush.bf16.msra.mxu0 %v376
        %400 = vmatmul.bf16.gmra.mxu0 %v323
        %v401 = vpop.f32.mrf.mxu0
        %v402 = vadd.f32 %v343, %v401
        %v403 = vpop.f32.mrf.mxu0
        %v404 = vadd.f32 %v343, %v403
        %405 = vmatmul.bf16.gmra.mxu0 %v324
        %v406 = vpop.f32.mrf.mxu0
        %v407 = vadd.f32 %v343, %v406
        %v408 = vpop.f32.mrf.mxu0
        %v409 = vadd.f32 %v343, %v408
        %410 = vmatmul.bf16.gmra.mxu0 %v325
        %v411 = vpop.f32.mrf.mxu0
        %v412 = vadd.f32 %v343, %v411
        %v413 = vpop.f32.mrf.mxu0
        %v414 = vadd.f32 %v343, %v413
        %415 = vmatmul.bf16.gmra.mxu0 %v326
        %v416 = vpop.f32.mrf.mxu0
        %v417 = vadd.f32 %v343, %v416
        %v418 = vpop.f32.mrf.mxu0
        %v419 = vadd.f32 %v343, %v418
        %420 = vdwg.mxu0
        %s421 = scalar_lea.vmem [#allocation5], 64
        %v422 = vld [vmem:[%s421] sm:$0xf]
        %v423 = vld [vmem:[%s421 + $0x4] sm:$0xf]
        %v424 = vld [vmem:[%s421 + $0x8] sm:$0xf]
        %v425 = vld [vmem:[%s421 + $0xc] sm:$0xf]
        %v426 = vld [vmem:[%s421 + $0x10] sm:$0xf]
        %v427 = vld [vmem:[%s421 + $0x14] sm:$0xf]
        %v428 = vld [vmem:[%s421 + $0x18] sm:$0xf]
        %v429 = vld [vmem:[%s421 + $0x1c] sm:$0xf]
        %v430 = vld [vmem:[%s421 + $0x20] sm:$0xf]
        %v431 = vld [vmem:[%s421 + $0x24] sm:$0xf]
        %v432 = vld [vmem:[%s421 + $0x28] sm:$0xf]
        %v433 = vld [vmem:[%s421 + $0x2c] sm:$0xf]
        %v434 = vld [vmem:[%s421 + $0x30] sm:$0xf]
        %v435 = vld [vmem:[%s421 + $0x34] sm:$0xf]
        %v436 = vld [vmem:[%s421 + $0x38] sm:$0xf]
        %v437 = vld [vmem:[%s421 + $0x3c] sm:$0xf]
        %v438 = vperm.slane %v313, 1
        %v455 = vunpack.c.l.b16 %v422
        %v456 = vunpack.c.l.b16 %v423
        %v457 = vunpack.c.l.b16 %v424
        %v458 = vunpack.c.l.b16 %v425
        %v459 = vunpack.c.l.b16 %v426
        %v460 = vunpack.c.l.b16 %v427
        %v461 = vunpack.c.l.b16 %v428
        %v462 = vunpack.c.l.b16 %v429
        %v463 = vunpack.c.l.b16 %v430
        %v464 = vunpack.c.l.b16 %v431
        %v465 = vunpack.c.l.b16 %v432
        %v466 = vunpack.c.l.b16 %v433
        %v467 = vunpack.c.l.b16 %v434
        %v468 = vunpack.c.l.b16 %v435
        %v469 = vunpack.c.l.b16 %v436
        %v470 = vunpack.c.l.b16 %v437
        %v471 = vpack.c.b16 %v456, %v455
        %v472 = vpack.c.b16 %v458, %v457
        %v473 = vpack.c.b16 %v460, %v459
        %v474 = vpack.c.b16 %v462, %v461
        %v475 = vpack.c.b16 %v464, %v463
        %v476 = vpack.c.b16 %v466, %v465
        %v477 = vpack.c.b16 %v468, %v467
        %v478 = vpack.c.b16 %v470, %v469
        %487 = vmatpush.bf16.msra.mxu0 %v478
        %488 = vmatpush.bf16.msra.mxu0 %v477
        %489 = vmatpush.bf16.msra.mxu0 %v476
        %490 = vmatpush.bf16.msra.mxu0 %v475
        %491 = vmatpush.bf16.msra.mxu0 %v474
        %492 = vmatpush.bf16.msra.mxu0 %v473
        %493 = vmatpush.bf16.msra.mxu0 %v472
        %494 = vmatpush.bf16.msra.mxu0 %v471
        %495 = vmatmul.bf16.gmra.mxu0 %v323
        %v496 = vpop.f32.mrf.mxu0
        %v497 = vadd.f32 %v438, %v496
        %v498 = vpop.f32.mrf.mxu0
        %v499 = vadd.f32 %v438, %v498
        %500 = vmatmul.bf16.gmra.mxu0 %v324
        %v501 = vpop.f32.mrf.mxu0
        %v502 = vadd.f32 %v438, %v501
        %v503 = vpop.f32.mrf.mxu0
        %v504 = vadd.f32 %v438, %v503
        %505 = vmatmul.bf16.gmra.mxu0 %v325
        %v506 = vpop.f32.mrf.mxu0
        %v507 = vadd.f32 %v438, %v506
        %v508 = vpop.f32.mrf.mxu0
        %v509 = vadd.f32 %v438, %v508
        %510 = vmatmul.bf16.gmra.mxu0 %v326
        %v511 = vpop.f32.mrf.mxu0
        %v512 = vadd.f32 %v438, %v511
        %v513 = vpop.f32.mrf.mxu0
        %v514 = vadd.f32 %v438, %v513
        %515 = vdwg.mxu0
        %s516 = scalar_lea.vmem [#allocation5], 128
        %v517 = vld [vmem:[%s516] sm:$0xf]
        %v518 = vld [vmem:[%s516 + $0x4] sm:$0xf]
        %v519 = vld [vmem:[%s516 + $0x8] sm:$0xf]
        %v520 = vld [vmem:[%s516 + $0xc] sm:$0xf]
        %v521 = vld [vmem:[%s516 + $0x10] sm:$0xf]
        %v522 = vld [vmem:[%s516 + $0x14] sm:$0xf]
        %v523 = vld [vmem:[%s516 + $0x18] sm:$0xf]
        %v524 = vld [vmem:[%s516 + $0x1c] sm:$0xf]
        %v525 = vld [vmem:[%s516 + $0x20] sm:$0xf]
        %v526 = vld [vmem:[%s516 + $0x24] sm:$0xf]
        %v527 = vld [vmem:[%s516 + $0x28] sm:$0xf]
        %v528 = vld [vmem:[%s516 + $0x2c] sm:$0xf]
        %v529 = vld [vmem:[%s516 + $0x30] sm:$0xf]
        %v530 = vld [vmem:[%s516 + $0x34] sm:$0xf]
        %v531 = vld [vmem:[%s516 + $0x38] sm:$0xf]
        %v532 = vld [vmem:[%s516 + $0x3c] sm:$0xf]
        %v533 = vperm.slane %v313, 2
        %v550 = vunpack.c.l.b16 %v517
        %v551 = vunpack.c.l.b16 %v518
        %v552 = vunpack.c.l.b16 %v519
        %v553 = vunpack.c.l.b16 %v520
        %v554 = vunpack.c.l.b16 %v521
        %v555 = vunpack.c.l.b16 %v522
        %v556 = vunpack.c.l.b16 %v523
        %v557 = vunpack.c.l.b16 %v524
        %v558 = vunpack.c.l.b16 %v525
        %v559 = vunpack.c.l.b16 %v526
        %v560 = vunpack.c.l.b16 %v527
        %v561 = vunpack.c.l.b16 %v528
        %v562 = vunpack.c.l.b16 %v529
        %v563 = vunpack.c.l.b16 %v530
        %v564 = vunpack.c.l.b16 %v531
        %v565 = vunpack.c.l.b16 %v532
        %v566 = vpack.c.b16 %v551, %v550
        %v567 = vpack.c.b16 %v553, %v552
        %v568 = vpack.c.b16 %v555, %v554
        %v569 = vpack.c.b16 %v557, %v556
        %v570 = vpack.c.b16 %v559, %v558
        %v571 = vpack.c.b16 %v561, %v560
        %v572 = vpack.c.b16 %v563, %v562
        %v573 = vpack.c.b16 %v565, %v564
        %582 = vmatpush.bf16.msra.mxu0 %v573
        %583 = vmatpush.bf16.msra.mxu0 %v572
        %584 = vmatpush.bf16.msra.mxu0 %v571
        %585 = vmatpush.bf16.msra.mxu0 %v570
        %586 = vmatpush.bf16.msra.mxu0 %v569
        %587 = vmatpush.bf16.msra.mxu0 %v568
        %588 = vmatpush.bf16.msra.mxu0 %v567
        %589 = vmatpush.bf16.msra.mxu0 %v566
        %590 = vmatmul.bf16.gmra.mxu0 %v323
        %v591 = vpop.f32.mrf.mxu0
        %v592 = vadd.f32 %v533, %v591
        %v593 = vpop.f32.mrf.mxu0
        %v594 = vadd.f32 %v533, %v593
        %595 = vmatmul.bf16.gmra.mxu0 %v324
        %v596 = vpop.f32.mrf.mxu0
        %v597 = vadd.f32 %v533, %v596
        %v598 = vpop.f32.mrf.mxu0
        %v599 = vadd.f32 %v533, %v598
        %600 = vmatmul.bf16.gmra.mxu0 %v325
        %v601 = vpop.f32.mrf.mxu0
        %v602 = vadd.f32 %v533, %v601
        %v603 = vpop.f32.mrf.mxu0
        %v604 = vadd.f32 %v533, %v603
        %605 = vmatmul.bf16.gmra.mxu0 %v326
        %v606 = vpop.f32.mrf.mxu0
        %v607 = vadd.f32 %v533, %v606
        %v608 = vpop.f32.mrf.mxu0
        %v609 = vadd.f32 %v533, %v608
        %610 = vdwg.mxu0
        %v611 = vmul.f32 %v592, 0.5
        %v612 = vmul.f32 %v594, 0.5
        %v613 = vmul.f32 %v597, 0.5
        %v614 = vmul.f32 %v599, 0.5
        %v615 = vmul.f32 %v602, 0.5
        %v616 = vmul.f32 %v604, 0.5
        %v617 = vmul.f32 %v607, 0.5
        %v618 = vmul.f32 %v609, 0.5
        %v619 = vmul.f32 %v592, 0.70710677
        %v620 = vmul.f32 %v594, 0.70710677
        %v621 = vmul.f32 %v597, 0.70710677
        %v622 = vmul.f32 %v599, 0.70710677
        %v623 = vmul.f32 %v602, 0.70710677
        %v624 = vmul.f32 %v604, 0.70710677
        %v625 = vmul.f32 %v607, 0.70710677
        %v626 = vmul.f32 %v609, 0.70710677
        %v627 = vmul.f32 %v619, %v619
        %v628 = vmin.f32 16.0, %v627
        %v629 = vmul.f32 %v628, 2.1237322e-06
        %v630 = vadd.f32 %v629, 0.00028619796
        %v631 = vmul.f32 %v628, %v630
        %v632 = vadd.f32 %v631, 0.0036580483
        %v633 = vmul.f32 %v628, %v632
        %v634 = vadd.f32 %v633, 0.05243302
        %v635 = vmul.f32 %v628, %v634
        %v636 = vadd.f32 %v635, 0.18741608
        %v637 = vmul.f32 %v628, %v636
        %v638 = vadd.f32 %v637, 1.1283791
        %v639 = vmul.f32 %v619, %v638
        %v640 = vmul.f32 %v628, 3.8918573e-05
        %v641 = vadd.f32 %v640, 0.001143296
        %v642 = vmul.f32 %v628, %v641
        %v643 = vadd.f32 %v642, 0.014752088
        %v644 = vmul.f32 %v628, %v643
        %v645 = vadd.f32 %v644, 0.112945676
        %v646 = vmul.f32 %v628, %v645
        %v647 = vadd.f32 %v646, 0.4994258
        %v648 = vmul.f32 %v628, %v647
        %v649 = vadd.f32 %v648, 1.0
        %v650 = vrcp.pop %v649
        %v651 = vmul.f32 %v649, %v650
        %v652 = vsub.f32 1.0, %v651
        %v653 = vmul.f32 %v650, %v652
        %v654 = vadd.f32 %v650, %v653
        %vm655 = vweird.f32 %v649
        %vm656 = vweird.f32 %v650
        %vm657 = vmor %vm655, %vm656
        %v658 = vsel %vm657, %v650, %v654
        %v659 = vand.u32 2147483647, %v649
        %vm660 = vcmp.eq.f32.partialorder %v659, 8.507059e+37
        %v661 = vand.u32 %v649, 2147483648
        %v662 = vor.u32 1.1754944e-38, %v661
        %v663 = vsel %vm660, %v662, %v658
        %v664 = vmul.f32 %v639, %v663
        %v665 = vmin.f32 %v664, 1.0
        %v666 = vmax.f32 %v665, -1.0
        %v667 = vmul.f32 %v620, %v620
        %v668 = vmin.f32 16.0, %v667
        %v669 = vmul.f32 %v668, 2.1237322e-06
        %v670 = vadd.f32 %v669, 0.00028619796
        %v671 = vmul.f32 %v668, %v670
        %v672 = vadd.f32 %v671, 0.0036580483
        %v673 = vmul.f32 %v668, %v672
        %v674 = vadd.f32 %v673, 0.05243302
        %v675 = vmul.f32 %v668, %v674
        %v676 = vadd.f32 %v675, 0.18741608
        %v677 = vmul.f32 %v668, %v676
        %v678 = vadd.f32 %v677, 1.1283791
        %v679 = vmul.f32 %v620, %v678
        %v680 = vmul.f32 %v668, 3.8918573e-05
        %v681 = vadd.f32 %v680, 0.001143296
        %v682 = vmul.f32 %v668, %v681
        %v683 = vadd.f32 %v682, 0.014752088
        %v684 = vmul.f32 %v668, %v683
        %v685 = vadd.f32 %v684, 0.112945676
        %v686 = vmul.f32 %v668, %v685
        %v687 = vadd.f32 %v686, 0.4994258
        %v688 = vmul.f32 %v668, %v687
        %v689 = vadd.f32 %v688, 1.0
        %v690 = vrcp.pop %v689
        %v691 = vmul.f32 %v689, %v690
        %v692 = vsub.f32 1.0, %v691
        %v693 = vmul.f32 %v690, %v692
        %v694 = vadd.f32 %v690, %v693
        %vm695 = vweird.f32 %v689
        %vm696 = vweird.f32 %v690
        %vm697 = vmor %vm695, %vm696
        %v698 = vsel %vm697, %v690, %v694
        %v699 = vand.u32 2147483647, %v689
        %vm700 = vcmp.eq.f32.partialorder %v699, 8.507059e+37
        %v701 = vand.u32 %v689, 2147483648
        %v702 = vor.u32 1.1754944e-38, %v701
        %v703 = vsel %vm700, %v702, %v698
        %v704 = vmul.f32 %v679, %v703
        %v705 = vmin.f32 %v704, 1.0
        %v706 = vmax.f32 %v705, -1.0
        %v707 = vmul.f32 %v621, %v621
        %v708 = vmin.f32 16.0, %v707
        %v709 = vmul.f32 %v708, 2.1237322e-06
        %v710 = vadd.f32 %v709, 0.00028619796
        %v711 = vmul.f32 %v708, %v710
        %v712 = vadd.f32 %v711, 0.0036580483
        %v713 = vmul.f32 %v708, %v712
        %v714 = vadd.f32 %v713, 0.05243302
        %v715 = vmul.f32 %v708, %v714
        %v716 = vadd.f32 %v715, 0.18741608
        %v717 = vmul.f32 %v708, %v716
        %v718 = vadd.f32 %v717, 1.1283791
        %v719 = vmul.f32 %v621, %v718
        %v720 = vmul.f32 %v708, 3.8918573e-05
        %v721 = vadd.f32 %v720, 0.001143296
        %v722 = vmul.f32 %v708, %v721
        %v723 = vadd.f32 %v722, 0.014752088
        %v724 = vmul.f32 %v708, %v723
        %v725 = vadd.f32 %v724, 0.112945676
        %v726 = vmul.f32 %v708, %v725
        %v727 = vadd.f32 %v726, 0.4994258
        %v728 = vmul.f32 %v708, %v727
        %v729 = vadd.f32 %v728, 1.0
        %v730 = vrcp.pop %v729
        %v731 = vmul.f32 %v729, %v730
        %v732 = vsub.f32 1.0, %v731
        %v733 = vmul.f32 %v730, %v732
        %v734 = vadd.f32 %v730, %v733
        %vm735 = vweird.f32 %v729
        %vm736 = vweird.f32 %v730
        %vm737 = vmor %vm735, %vm736
        %v738 = vsel %vm737, %v730, %v734
        %v739 = vand.u32 2147483647, %v729
        %vm740 = vcmp.eq.f32.partialorder %v739, 8.507059e+37
        %v741 = vand.u32 %v729, 2147483648
        %v742 = vor.u32 1.1754944e-38, %v741
        %v743 = vsel %vm740, %v742, %v738
        %v744 = vmul.f32 %v719, %v743
        %v745 = vmin.f32 %v744, 1.0
        %v746 = vmax.f32 %v745, -1.0
        %v747 = vmul.f32 %v622, %v622
        %v748 = vmin.f32 16.0, %v747
        %v749 = vmul.f32 %v748, 2.1237322e-06
        %v750 = vadd.f32 %v749, 0.00028619796
        %v751 = vmul.f32 %v748, %v750
        %v752 = vadd.f32 %v751, 0.0036580483
        %v753 = vmul.f32 %v748, %v752
        %v754 = vadd.f32 %v753, 0.05243302
        %v755 = vmul.f32 %v748, %v754
        %v756 = vadd.f32 %v755, 0.18741608
        %v757 = vmul.f32 %v748, %v756
        %v758 = vadd.f32 %v757, 1.1283791
        %v759 = vmul.f32 %v622, %v758
        %v760 = vmul.f32 %v748, 3.8918573e-05
        %v761 = vadd.f32 %v760, 0.001143296
        %v762 = vmul.f32 %v748, %v761
        %v763 = vadd.f32 %v762, 0.014752088
        %v764 = vmul.f32 %v748, %v763
        %v765 = vadd.f32 %v764, 0.112945676
        %v766 = vmul.f32 %v748, %v765
        %v767 = vadd.f32 %v766, 0.4994258
        %v768 = vmul.f32 %v748, %v767
        %v769 = vadd.f32 %v768, 1.0
        %v770 = vrcp.pop %v769
        %v771 = vmul.f32 %v769, %v770
        %v772 = vsub.f32 1.0, %v771
        %v773 = vmul.f32 %v770, %v772
        %v774 = vadd.f32 %v770, %v773
        %vm775 = vweird.f32 %v769
        %vm776 = vweird.f32 %v770
        %vm777 = vmor %vm775, %vm776
        %v778 = vsel %vm777, %v770, %v774
        %v779 = vand.u32 2147483647, %v769
        %vm780 = vcmp.eq.f32.partialorder %v779, 8.507059e+37
        %v781 = vand.u32 %v769, 2147483648
        %v782 = vor.u32 1.1754944e-38, %v781
        %v783 = vsel %vm780, %v782, %v778
        %v784 = vmul.f32 %v759, %v783
        %v785 = vmin.f32 %v784, 1.0
        %v786 = vmax.f32 %v785, -1.0
        %v787 = vmul.f32 %v623, %v623
        %v788 = vmin.f32 16.0, %v787
        %v789 = vmul.f32 %v788, 2.1237322e-06
        %v790 = vadd.f32 %v789, 0.00028619796
        %v791 = vmul.f32 %v788, %v790
        %v792 = vadd.f32 %v791, 0.0036580483
        %v793 = vmul.f32 %v788, %v792
        %v794 = vadd.f32 %v793, 0.05243302
        %v795 = vmul.f32 %v788, %v794
        %v796 = vadd.f32 %v795, 0.18741608
        %v797 = vmul.f32 %v788, %v796
        %v798 = vadd.f32 %v797, 1.1283791
        %v799 = vmul.f32 %v623, %v798
        %v800 = vmul.f32 %v788, 3.8918573e-05
        %v801 = vadd.f32 %v800, 0.001143296
        %v802 = vmul.f32 %v788, %v801
        %v803 = vadd.f32 %v802, 0.014752088
        %v804 = vmul.f32 %v788, %v803
        %v805 = vadd.f32 %v804, 0.112945676
        %v806 = vmul.f32 %v788, %v805
        %v807 = vadd.f32 %v806, 0.4994258
        %v808 = vmul.f32 %v788, %v807
        %v809 = vadd.f32 %v808, 1.0
        %v810 = vrcp.pop %v809
        %v811 = vmul.f32 %v809, %v810
        %v812 = vsub.f32 1.0, %v811
        %v813 = vmul.f32 %v810, %v812
        %v814 = vadd.f32 %v810, %v813
        %vm815 = vweird.f32 %v809
        %vm816 = vweird.f32 %v810
        %vm817 = vmor %vm815, %vm816
        %v818 = vsel %vm817, %v810, %v814
        %v819 = vand.u32 2147483647, %v809
        %vm820 = vcmp.eq.f32.partialorder %v819, 8.507059e+37
        %v821 = vand.u32 %v809, 2147483648
        %v822 = vor.u32 1.1754944e-38, %v821
        %v823 = vsel %vm820, %v822, %v818
        %v824 = vmul.f32 %v799, %v823
        %v825 = vmin.f32 %v824, 1.0
        %v826 = vmax.f32 %v825, -1.0
        %v827 = vmul.f32 %v624, %v624
        %v828 = vmin.f32 16.0, %v827
        %v829 = vmul.f32 %v828, 2.1237322e-06
        %v830 = vadd.f32 %v829, 0.00028619796
        %v831 = vmul.f32 %v828, %v830
        %v832 = vadd.f32 %v831, 0.0036580483
        %v833 = vmul.f32 %v828, %v832
        %v834 = vadd.f32 %v833, 0.05243302
        %v835 = vmul.f32 %v828, %v834
        %v836 = vadd.f32 %v835, 0.18741608
        %v837 = vmul.f32 %v828, %v836
        %v838 = vadd.f32 %v837, 1.1283791
        %v839 = vmul.f32 %v624, %v838
        %v840 = vmul.f32 %v828, 3.8918573e-05
        %v841 = vadd.f32 %v840, 0.001143296
        %v842 = vmul.f32 %v828, %v841
        %v843 = vadd.f32 %v842, 0.014752088
        %v844 = vmul.f32 %v828, %v843
        %v845 = vadd.f32 %v844, 0.112945676
        %v846 = vmul.f32 %v828, %v845
        %v847 = vadd.f32 %v846, 0.4994258
        %v848 = vmul.f32 %v828, %v847
        %v849 = vadd.f32 %v848, 1.0
        %v850 = vrcp.pop %v849
        %v851 = vmul.f32 %v849, %v850
        %v852 = vsub.f32 1.0, %v851
        %v853 = vmul.f32 %v850, %v852
        %v854 = vadd.f32 %v850, %v853
        %vm855 = vweird.f32 %v849
        %vm856 = vweird.f32 %v850
        %vm857 = vmor %vm855, %vm856
        %v858 = vsel %vm857, %v850, %v854
        %v859 = vand.u32 2147483647, %v849
        %vm860 = vcmp.eq.f32.partialorder %v859, 8.507059e+37
        %v861 = vand.u32 %v849, 2147483648
        %v862 = vor.u32 1.1754944e-38, %v861
        %v863 = vsel %vm860, %v862, %v858
        %v864 = vmul.f32 %v839, %v863
        %v865 = vmin.f32 %v864, 1.0
        %v866 = vmax.f32 %v865, -1.0
        %v867 = vmul.f32 %v625, %v625
        %v868 = vmin.f32 16.0, %v867
        %v869 = vmul.f32 %v868, 2.1237322e-06
        %v870 = vadd.f32 %v869, 0.00028619796
        %v871 = vmul.f32 %v868, %v870
        %v872 = vadd.f32 %v871, 0.0036580483
        %v873 = vmul.f32 %v868, %v872
        %v874 = vadd.f32 %v873, 0.05243302
        %v875 = vmul.f32 %v868, %v874
        %v876 = vadd.f32 %v875, 0.18741608
        %v877 = vmul.f32 %v868, %v876
        %v878 = vadd.f32 %v877, 1.1283791
        %v879 = vmul.f32 %v625, %v878
        %v880 = vmul.f32 %v868, 3.8918573e-05
        %v881 = vadd.f32 %v880, 0.001143296
        %v882 = vmul.f32 %v868, %v881
        %v883 = vadd.f32 %v882, 0.014752088
        %v884 = vmul.f32 %v868, %v883
        %v885 = vadd.f32 %v884, 0.112945676
        %v886 = vmul.f32 %v868, %v885
        %v887 = vadd.f32 %v886, 0.4994258
        %v888 = vmul.f32 %v868, %v887
        %v889 = vadd.f32 %v888, 1.0
        %v890 = vrcp.pop %v889
        %v891 = vmul.f32 %v889, %v890
        %v892 = vsub.f32 1.0, %v891
        %v893 = vmul.f32 %v890, %v892
        %v894 = vadd.f32 %v890, %v893
        %vm895 = vweird.f32 %v889
        %vm896 = vweird.f32 %v890
        %vm897 = vmor %vm895, %vm896
        %v898 = vsel %vm897, %v890, %v894
        %v899 = vand.u32 2147483647, %v889
        %vm900 = vcmp.eq.f32.partialorder %v899, 8.507059e+37
        %v901 = vand.u32 %v889, 2147483648
        %v902 = vor.u32 1.1754944e-38, %v901
        %v903 = vsel %vm900, %v902, %v898
        %v904 = vmul.f32 %v879, %v903
        %v905 = vmin.f32 %v904, 1.0
        %v906 = vmax.f32 %v905, -1.0
        %v907 = vmul.f32 %v626, %v626
        %v908 = vmin.f32 16.0, %v907
        %v909 = vmul.f32 %v908, 2.1237322e-06
        %v910 = vadd.f32 %v909, 0.00028619796
        %v911 = vmul.f32 %v908, %v910
        %v912 = vadd.f32 %v911, 0.0036580483
        %v913 = vmul.f32 %v908, %v912
        %v914 = vadd.f32 %v913, 0.05243302
        %v915 = vmul.f32 %v908, %v914
        %v916 = vadd.f32 %v915, 0.18741608
        %v917 = vmul.f32 %v908, %v916
        %v918 = vadd.f32 %v917, 1.1283791
        %v919 = vmul.f32 %v626, %v918
        %v920 = vmul.f32 %v908, 3.8918573e-05
        %v921 = vadd.f32 %v920, 0.001143296
        %v922 = vmul.f32 %v908, %v921
        %v923 = vadd.f32 %v922, 0.014752088
        %v924 = vmul.f32 %v908, %v923
        %v925 = vadd.f32 %v924, 0.112945676
        %v926 = vmul.f32 %v908, %v925
        %v927 = vadd.f32 %v926, 0.4994258
        %v928 = vmul.f32 %v908, %v927
        %v929 = vadd.f32 %v928, 1.0
        %v930 = vrcp.pop %v929
        %v931 = vmul.f32 %v929, %v930
        %v932 = vsub.f32 1.0, %v931
        %v933 = vmul.f32 %v930, %v932
        %v934 = vadd.f32 %v930, %v933
        %vm935 = vweird.f32 %v929
        %vm936 = vweird.f32 %v930
        %vm937 = vmor %vm935, %vm936
        %v938 = vsel %vm937, %v930, %v934
        %v939 = vand.u32 2147483647, %v929
        %vm940 = vcmp.eq.f32.partialorder %v939, 8.507059e+37
        %v941 = vand.u32 %v929, 2147483648
        %v942 = vor.u32 1.1754944e-38, %v941
        %v943 = vsel %vm940, %v942, %v938
        %v944 = vmul.f32 %v919, %v943
        %v945 = vmin.f32 %v944, 1.0
        %v946 = vmax.f32 %v945, -1.0
        %v947 = vadd.f32 %v666, 1.0
        %v948 = vadd.f32 %v706, 1.0
        %v949 = vadd.f32 %v746, 1.0
        %v950 = vadd.f32 %v786, 1.0
        %v951 = vadd.f32 %v826, 1.0
        %v952 = vadd.f32 %v866, 1.0
        %v953 = vadd.f32 %v906, 1.0
        %v954 = vadd.f32 %v946, 1.0
        %v955 = vmul.f32 %v611, %v947
        %v956 = vmul.f32 %v612, %v948
        %v957 = vmul.f32 %v613, %v949
        %v958 = vmul.f32 %v614, %v950
        %v959 = vmul.f32 %v615, %v951
        %v960 = vmul.f32 %v616, %v952
        %v961 = vmul.f32 %v617, %v953
        %v962 = vmul.f32 %v618, %v954
        %963 = vadd.xlane.f32.xlu0 %v955
        %v964 = vpop.xlane.xlu0 %963
        %965 = vadd.xlane.f32.xlu0 %v956
        %v966 = vpop.xlane.xlu0 %965
        %967 = vadd.xlane.f32.xlu0 %v957
        %v968 = vpop.xlane.xlu0 %967
        %969 = vadd.xlane.f32.xlu0 %v958
        %v970 = vpop.xlane.xlu0 %969
        %971 = vadd.xlane.f32.xlu0 %v959
        %v972 = vpop.xlane.xlu0 %971
        %973 = vadd.xlane.f32.xlu0 %v960
        %v974 = vpop.xlane.xlu0 %973
        %975 = vadd.xlane.f32.xlu0 %v961
        %v976 = vpop.xlane.xlu0 %975
        %977 = vadd.xlane.f32.xlu0 %v962
        %v978 = vpop.xlane.xlu0 %977
        %v979 = vrcp.pop 128.0
        %v980 = vmul.f32 128.0, %v979
        %v981 = vsub.f32 1.0, %v980
        %v982 = vmul.f32 %v979, %v981
        %v983 = vadd.f32 %v979, %v982
        %vm984 = vweird.f32 %v979
        %v985 = vsel %vm984, %v979, %v983
        %v986 = vmul.f32 %v964, %v985
        %v987 = vmul.f32 %v966, %v985
        %v988 = vmul.f32 %v968, %v985
        %v989 = vmul.f32 %v970, %v985
        %v990 = vmul.f32 %v972, %v985
        %v991 = vmul.f32 %v974, %v985
        %v992 = vmul.f32 %v976, %v985
        %v993 = vmul.f32 %v978, %v985
        %v994 = vsub.f32 %v955, %v986
        %v995 = vsub.f32 %v956, %v987
        %v996 = vsub.f32 %v957, %v988
        %v997 = vsub.f32 %v958, %v989
        %v998 = vsub.f32 %v959, %v990
        %v999 = vsub.f32 %v960, %v991
        %v1000 = vsub.f32 %v961, %v992
        %v1001 = vsub.f32 %v962, %v993
        %v1002 = vmul.f32 %v994, %v994
        %v1003 = vmul.f32 %v995, %v995
        %v1004 = vmul.f32 %v996, %v996
        %v1005 = vmul.f32 %v997, %v997
        %v1006 = vmul.f32 %v998, %v998
        %v1007 = vmul.f32 %v999, %v999
        %v1008 = vmul.f32 %v1000, %v1000
        %v1009 = vmul.f32 %v1001, %v1001
        %1010 = vadd.xlane.f32.xlu0 %v1002
        %v1011 = vpop.xlane.xlu0 %1010
        %1012 = vadd.xlane.f32.xlu0 %v1003
        %v1013 = vpop.xlane.xlu0 %1012
        %1014 = vadd.xlane.f32.xlu0 %v1004
        %v1015 = vpop.xlane.xlu0 %1014
        %1016 = vadd.xlane.f32.xlu0 %v1005
        %v1017 = vpop.xlane.xlu0 %1016
        %1018 = vadd.xlane.f32.xlu0 %v1006
        %v1019 = vpop.xlane.xlu0 %1018
        %1020 = vadd.xlane.f32.xlu0 %v1007
        %v1021 = vpop.xlane.xlu0 %1020
        %1022 = vadd.xlane.f32.xlu0 %v1008
        %v1023 = vpop.xlane.xlu0 %1022
        %1024 = vadd.xlane.f32.xlu0 %v1009
        %v1025 = vpop.xlane.xlu0 %1024
        %v1026 = vmul.f32 %v1011, %v985
        %v1027 = vmul.f32 %v1013, %v985
        %v1028 = vmul.f32 %v1015, %v985
        %v1029 = vmul.f32 %v1017, %v985
        %v1030 = vmul.f32 %v1019, %v985
        %v1031 = vmul.f32 %v1021, %v985
        %v1032 = vmul.f32 %v1023, %v985
        %v1033 = vmul.f32 %v1025, %v985
        %v1034 = vadd.f32 %v1026, 1e-05
        %v1035 = vadd.f32 %v1027, 1e-05
        %v1036 = vadd.f32 %v1028, 1e-05
        %v1037 = vadd.f32 %v1029, 1e-05
        %v1038 = vadd.f32 %v1030, 1e-05
        %v1039 = vadd.f32 %v1031, 1e-05
        %v1040 = vadd.f32 %v1032, 1e-05
        %v1041 = vadd.f32 %v1033, 1e-05
        %v1042 = vrsqrt.pop %v1034
        %v1043 = vmul.f32 %v1042, %v1034
        %v1044 = vmul.f32 %v1043, %v1042
        %v1045 = vmul.f32 0.5, %v1044
        %v1046 = vsub.f32 1.5, %v1045
        %v1047 = vmul.f32 %v1042, %v1046
        %vm1048 = vweird.f32 %v1034
        %vm1049 = vweird.f32 %v1042
        %vm1050 = vmor %vm1048, %vm1049
        %v1051 = vsel %vm1050, %v1042, %v1047
        %v1052 = vrsqrt.pop %v1035
        %v1053 = vmul.f32 %v1052, %v1035
        %v1054 = vmul.f32 %v1053, %v1052
        %v1055 = vmul.f32 0.5, %v1054
        %v1056 = vsub.f32 1.5, %v1055
        %v1057 = vmul.f32 %v1052, %v1056
        %vm1058 = vweird.f32 %v1035
        %vm1059 = vweird.f32 %v1052
        %vm1060 = vmor %vm1058, %vm1059
        %v1061 = vsel %vm1060, %v1052, %v1057
        %v1062 = vrsqrt.pop %v1036
        %v1063 = vmul.f32 %v1062, %v1036
        %v1064 = vmul.f32 %v1063, %v1062
        %v1065 = vmul.f32 0.5, %v1064
        %v1066 = vsub.f32 1.5, %v1065
        %v1067 = vmul.f32 %v1062, %v1066
        %vm1068 = vweird.f32 %v1036
        %vm1069 = vweird.f32 %v1062
        %vm1070 = vmor %vm1068, %vm1069
        %v1071 = vsel %vm1070, %v1062, %v1067
        %v1072 = vrsqrt.pop %v1037
        %v1073 = vmul.f32 %v1072, %v1037
        %v1074 = vmul.f32 %v1073, %v1072
        %v1075 = vmul.f32 0.5, %v1074
        %v1076 = vsub.f32 1.5, %v1075
        %v1077 = vmul.f32 %v1072, %v1076
        %vm1078 = vweird.f32 %v1037
        %vm1079 = vweird.f32 %v1072
        %vm1080 = vmor %vm1078, %vm1079
        %v1081 = vsel %vm1080, %v1072, %v1077
        %v1082 = vrsqrt.pop %v1038
        %v1083 = vmul.f32 %v1082, %v1038
        %v1084 = vmul.f32 %v1083, %v1082
        %v1085 = vmul.f32 0.5, %v1084
        %v1086 = vsub.f32 1.5, %v1085
        %v1087 = vmul.f32 %v1082, %v1086
        %vm1088 = vweird.f32 %v1038
        %vm1089 = vweird.f32 %v1082
        %vm1090 = vmor %vm1088, %vm1089
        %v1091 = vsel %vm1090, %v1082, %v1087
        %v1092 = vrsqrt.pop %v1039
        %v1093 = vmul.f32 %v1092, %v1039
        %v1094 = vmul.f32 %v1093, %v1092
        %v1095 = vmul.f32 0.5, %v1094
        %v1096 = vsub.f32 1.5, %v1095
        %v1097 = vmul.f32 %v1092, %v1096
        %vm1098 = vweird.f32 %v1039
        %vm1099 = vweird.f32 %v1092
        %vm1100 = vmor %vm1098, %vm1099
        %v1101 = vsel %vm1100, %v1092, %v1097
        %v1102 = vrsqrt.pop %v1040
        %v1103 = vmul.f32 %v1102, %v1040
        %v1104 = vmul.f32 %v1103, %v1102
        %v1105 = vmul.f32 0.5, %v1104
        %v1106 = vsub.f32 1.5, %v1105
        %v1107 = vmul.f32 %v1102, %v1106
        %vm1108 = vweird.f32 %v1040
        %vm1109 = vweird.f32 %v1102
        %vm1110 = vmor %vm1108, %vm1109
        %v1111 = vsel %vm1110, %v1102, %v1107
        %v1112 = vrsqrt.pop %v1041
        %v1113 = vmul.f32 %v1112, %v1041
        %v1114 = vmul.f32 %v1113, %v1112
        %v1115 = vmul.f32 0.5, %v1114
        %v1116 = vsub.f32 1.5, %v1115
        %v1117 = vmul.f32 %v1112, %v1116
        %vm1118 = vweird.f32 %v1041
        %vm1119 = vweird.f32 %v1112
        %vm1120 = vmor %vm1118, %vm1119
        %v1121 = vsel %vm1120, %v1112, %v1117
        %v1122 = vmul.f32 %v994, %v1051
        %v1123 = vmul.f32 %v995, %v1061
        %v1124 = vmul.f32 %v996, %v1071
        %v1125 = vmul.f32 %v997, %v1081
        %v1126 = vmul.f32 %v998, %v1091
        %v1127 = vmul.f32 %v999, %v1101
        %v1128 = vmul.f32 %v1000, %v1111
        %v1129 = vmul.f32 %v1001, %v1121
        %v1130 = vperm.slane %v313, 6
        %v1131 = vmul.f32 %v1122, %v1130
        %v1132 = vmul.f32 %v1123, %v1130
        %v1133 = vmul.f32 %v1124, %v1130
        %v1134 = vmul.f32 %v1125, %v1130
        %v1135 = vmul.f32 %v1126, %v1130
        %v1136 = vmul.f32 %v1127, %v1130
        %v1137 = vmul.f32 %v1128, %v1130
        %v1138 = vmul.f32 %v1129, %v1130
        %v1139 = vperm.slane %v313, 7
        %v1140 = vadd.f32 %v1131, %v1139
        %v1141 = vadd.f32 %v1132, %v1139
        %v1142 = vadd.f32 %v1133, %v1139
        %v1143 = vadd.f32 %v1134, %v1139
        %v1144 = vadd.f32 %v1135, %v1139
        %v1145 = vadd.f32 %v1136, %v1139
        %v1146 = vadd.f32 %v1137, %v1139
        %v1147 = vadd.f32 %v1138, %v1139
        %v1148 = vpack.c.bf16 %v1141, %v1140
        %v1149 = vpack.c.bf16 %v1143, %v1142
        %v1150 = vpack.c.bf16 %v1145, %v1144
        %v1151 = vpack.c.bf16 %v1147, %v1146
        %v1152 = vld [vmem:[#allocation8] sm:$0xf]
        %v1153 = vld [vmem:[#allocation8 + $0x4] sm:$0xf]
        %v1154 = vld [vmem:[#allocation8 + $0x8] sm:$0xf]
        %v1155 = vld [vmem:[#allocation8 + $0xc] sm:$0xf]
        %v1156 = vld [vmem:[#allocation8 + $0x10] sm:$0xf]
        %v1157 = vld [vmem:[#allocation8 + $0x14] sm:$0xf]
        %v1158 = vld [vmem:[#allocation8 + $0x18] sm:$0xf]
        %v1159 = vld [vmem:[#allocation8 + $0x1c] sm:$0xf]
        %v1160 = vld [vmem:[#allocation8 + $0x20] sm:$0xf]
        %v1161 = vld [vmem:[#allocation8 + $0x24] sm:$0xf]
        %v1162 = vld [vmem:[#allocation8 + $0x28] sm:$0xf]
        %v1163 = vld [vmem:[#allocation8 + $0x2c] sm:$0xf]
        %v1164 = vld [vmem:[#allocation8 + $0x30] sm:$0xf]
        %v1165 = vld [vmem:[#allocation8 + $0x34] sm:$0xf]
        %v1166 = vld [vmem:[#allocation8 + $0x38] sm:$0xf]
        %v1167 = vld [vmem:[#allocation8 + $0x3c] sm:$0xf]
        %v1168 = vperm.slane %v314, 0
        %v1185 = vunpack.c.l.b16 %v1152
        %v1186 = vunpack.c.l.b16 %v1153
        %v1187 = vunpack.c.l.b16 %v1154
        %v1188 = vunpack.c.l.b16 %v1155
        %v1189 = vunpack.c.l.b16 %v1156
        %v1190 = vunpack.c.l.b16 %v1157
        %v1191 = vunpack.c.l.b16 %v1158
        %v1192 = vunpack.c.l.b16 %v1159
        %v1193 = vunpack.c.l.b16 %v1160
        %v1194 = vunpack.c.l.b16 %v1161
        %v1195 = vunpack.c.l.b16 %v1162
        %v1196 = vunpack.c.l.b16 %v1163
        %v1197 = vunpack.c.l.b16 %v1164
        %v1198 = vunpack.c.l.b16 %v1165
        %v1199 = vunpack.c.l.b16 %v1166
        %v1200 = vunpack.c.l.b16 %v1167
        %v1201 = vpack.c.b16 %v1186, %v1185
        %v1202 = vpack.c.b16 %v1188, %v1187
        %v1203 = vpack.c.b16 %v1190, %v1189
        %v1204 = vpack.c.b16 %v1192, %v1191
        %v1205 = vpack.c.b16 %v1194, %v1193
        %v1206 = vpack.c.b16 %v1196, %v1195
        %v1207 = vpack.c.b16 %v1198, %v1197
        %v1208 = vpack.c.b16 %v1200, %v1199
        %1217 = vmatpush.bf16.msra.mxu0 %v1208
        %1218 = vmatpush.bf16.msra.mxu0 %v1207
        %1219 = vmatpush.bf16.msra.mxu0 %v1206
        %1220 = vmatpush.bf16.msra.mxu0 %v1205
        %1221 = vmatpush.bf16.msra.mxu0 %v1204
        %1222 = vmatpush.bf16.msra.mxu0 %v1203
        %1223 = vmatpush.bf16.msra.mxu0 %v1202
        %1224 = vmatpush.bf16.msra.mxu0 %v1201
        %1225 = vmatmul.bf16.gmra.mxu0 %v1148
        %v1226 = vpop.f32.mrf.mxu0
        %v1227 = vadd.f32 %v1168, %v1226
        %v1228 = vpop.f32.mrf.mxu0
        %v1229 = vadd.f32 %v1168, %v1228
        %1230 = vmatmul.bf16.gmra.mxu0 %v1149
        %v1231 = vpop.f32.mrf.mxu0
        %v1232 = vadd.f32 %v1168, %v1231
        %v1233 = vpop.f32.mrf.mxu0
        %v1234 = vadd.f32 %v1168, %v1233
        %1235 = vmatmul.bf16.gmra.mxu0 %v1150
        %v1236 = vpop.f32.mrf.mxu0
        %v1237 = vadd.f32 %v1168, %v1236
        %v1238 = vpop.f32.mrf.mxu0
        %v1239 = vadd.f32 %v1168, %v1238
        %1240 = vmatmul.bf16.gmra.mxu0 %v1151
        %v1241 = vpop.f32.mrf.mxu0
        %v1242 = vadd.f32 %v1168, %v1241
        %v1243 = vpop.f32.mrf.mxu0
        %v1244 = vadd.f32 %v1168, %v1243
        %1245 = vdwg.mxu0
        %v1246 = vxor.u32 %v1227, 2147483648
        %v1247 = vxor.u32 %v1229, 2147483648
        %v1248 = vxor.u32 %v1232, 2147483648
        %v1249 = vxor.u32 %v1234, 2147483648
        %v1250 = vxor.u32 %v1237, 2147483648
        %v1251 = vxor.u32 %v1239, 2147483648
        %v1252 = vxor.u32 %v1242, 2147483648
        %v1253 = vxor.u32 %v1244, 2147483648
        %v1254 = vmul.f32 %v1246, 1.442695
        %v1255 = vpow.pop %v1254
        %v1256 = vmul.f32 %v1247, 1.442695
        %v1257 = vpow.pop %v1256
        %v1258 = vmul.f32 %v1248, 1.442695
        %v1259 = vpow.pop %v1258
        %v1260 = vmul.f32 %v1249, 1.442695
        %v1261 = vpow.pop %v1260
        %v1262 = vmul.f32 %v1250, 1.442695
        %v1263 = vpow.pop %v1262
        %v1264 = vmul.f32 %v1251, 1.442695
        %v1265 = vpow.pop %v1264
        %v1266 = vmul.f32 %v1252, 1.442695
        %v1267 = vpow.pop %v1266
        %v1268 = vmul.f32 %v1253, 1.442695
        %v1269 = vpow.pop %v1268
        %v1270 = vadd.f32 %v1255, 1.0
        %v1271 = vadd.f32 %v1257, 1.0
        %v1272 = vadd.f32 %v1259, 1.0
        %v1273 = vadd.f32 %v1261, 1.0
        %v1274 = vadd.f32 %v1263, 1.0
        %v1275 = vadd.f32 %v1265, 1.0
        %v1276 = vadd.f32 %v1267, 1.0
        %v1277 = vadd.f32 %v1269, 1.0
        %v1278 = vrcp.pop %v1270
        %v1279 = vmul.f32 %v1270, %v1278
        %v1280 = vsub.f32 1.0, %v1279
        %v1281 = vmul.f32 %v1278, %v1280
        %v1282 = vadd.f32 %v1278, %v1281
        %vm1283 = vweird.f32 %v1270
        %vm1284 = vweird.f32 %v1278
        %vm1285 = vmor %vm1283, %vm1284
        %v1286 = vsel %vm1285, %v1278, %v1282
        %v1287 = vand.u32 2147483647, %v1270
        %vm1288 = vcmp.eq.f32.partialorder %v1287, 8.507059e+37
        %v1289 = vand.u32 %v1270, 2147483648
        %v1290 = vor.u32 1.1754944e-38, %v1289
        %v1291 = vsel %vm1288, %v1290, %v1286
        %v1292 = vmul.f32 1.0, %v1291
        %v1293 = vrcp.pop %v1271
        %v1294 = vmul.f32 %v1271, %v1293
        %v1295 = vsub.f32 1.0, %v1294
        %v1296 = vmul.f32 %v1293, %v1295
        %v1297 = vadd.f32 %v1293, %v1296
        %vm1298 = vweird.f32 %v1271
        %vm1299 = vweird.f32 %v1293
        %vm1300 = vmor %vm1298, %vm1299
        %v1301 = vsel %vm1300, %v1293, %v1297
        %v1302 = vand.u32 2147483647, %v1271
        %vm1303 = vcmp.eq.f32.partialorder %v1302, 8.507059e+37
        %v1304 = vand.u32 %v1271, 2147483648
        %v1305 = vor.u32 1.1754944e-38, %v1304
        %v1306 = vsel %vm1303, %v1305, %v1301
        %v1307 = vmul.f32 1.0, %v1306
        %v1308 = vrcp.pop %v1272
        %v1309 = vmul.f32 %v1272, %v1308
        %v1310 = vsub.f32 1.0, %v1309
        %v1311 = vmul.f32 %v1308, %v1310
        %v1312 = vadd.f32 %v1308, %v1311
        %vm1313 = vweird.f32 %v1272
        %vm1314 = vweird.f32 %v1308
        %vm1315 = vmor %vm1313, %vm1314
        %v1316 = vsel %vm1315, %v1308, %v1312
        %v1317 = vand.u32 2147483647, %v1272
        %vm1318 = vcmp.eq.f32.partialorder %v1317, 8.507059e+37
        %v1319 = vand.u32 %v1272, 2147483648
        %v1320 = vor.u32 1.1754944e-38, %v1319
        %v1321 = vsel %vm1318, %v1320, %v1316
        %v1322 = vmul.f32 1.0, %v1321
        %v1323 = vrcp.pop %v1273
        %v1324 = vmul.f32 %v1273, %v1323
        %v1325 = vsub.f32 1.0, %v1324
        %v1326 = vmul.f32 %v1323, %v1325
        %v1327 = vadd.f32 %v1323, %v1326
        %vm1328 = vweird.f32 %v1273
        %vm1329 = vweird.f32 %v1323
        %vm1330 = vmor %vm1328, %vm1329
        %v1331 = vsel %vm1330, %v1323, %v1327
        %v1332 = vand.u32 2147483647, %v1273
        %vm1333 = vcmp.eq.f32.partialorder %v1332, 8.507059e+37
        %v1334 = vand.u32 %v1273, 2147483648
        %v1335 = vor.u32 1.1754944e-38, %v1334
        %v1336 = vsel %vm1333, %v1335, %v1331
        %v1337 = vmul.f32 1.0, %v1336
        %v1338 = vrcp.pop %v1274
        %v1339 = vmul.f32 %v1274, %v1338
        %v1340 = vsub.f32 1.0, %v1339
        %v1341 = vmul.f32 %v1338, %v1340
        %v1342 = vadd.f32 %v1338, %v1341
        %vm1343 = vweird.f32 %v1274
        %vm1344 = vweird.f32 %v1338
        %vm1345 = vmor %vm1343, %vm1344
        %v1346 = vsel %vm1345, %v1338, %v1342
        %v1347 = vand.u32 2147483647, %v1274
        %vm1348 = vcmp.eq.f32.partialorder %v1347, 8.507059e+37
        %v1349 = vand.u32 %v1274, 2147483648
        %v1350 = vor.u32 1.1754944e-38, %v1349
        %v1351 = vsel %vm1348, %v1350, %v1346
        %v1352 = vmul.f32 1.0, %v1351
        %v1353 = vrcp.pop %v1275
        %v1354 = vmul.f32 %v1275, %v1353
        %v1355 = vsub.f32 1.0, %v1354
        %v1356 = vmul.f32 %v1353, %v1355
        %v1357 = vadd.f32 %v1353, %v1356
        %vm1358 = vweird.f32 %v1275
        %vm1359 = vweird.f32 %v1353
        %vm1360 = vmor %vm1358, %vm1359
        %v1361 = vsel %vm1360, %v1353, %v1357
        %v1362 = vand.u32 2147483647, %v1275
        %vm1363 = vcmp.eq.f32.partialorder %v1362, 8.507059e+37
        %v1364 = vand.u32 %v1275, 2147483648
        %v1365 = vor.u32 1.1754944e-38, %v1364
        %v1366 = vsel %vm1363, %v1365, %v1361
        %v1367 = vmul.f32 1.0, %v1366
        %v1368 = vrcp.pop %v1276
        %v1369 = vmul.f32 %v1276, %v1368
        %v1370 = vsub.f32 1.0, %v1369
        %v1371 = vmul.f32 %v1368, %v1370
        %v1372 = vadd.f32 %v1368, %v1371
        %vm1373 = vweird.f32 %v1276
        %vm1374 = vweird.f32 %v1368
        %vm1375 = vmor %vm1373, %vm1374
        %v1376 = vsel %vm1375, %v1368, %v1372
        %v1377 = vand.u32 2147483647, %v1276
        %vm1378 = vcmp.eq.f32.partialorder %v1377, 8.507059e+37
        %v1379 = vand.u32 %v1276, 2147483648
        %v1380 = vor.u32 1.1754944e-38, %v1379
        %v1381 = vsel %vm1378, %v1380, %v1376
        %v1382 = vmul.f32 1.0, %v1381
        %v1383 = vrcp.pop %v1277
        %v1384 = vmul.f32 %v1277, %v1383
        %v1385 = vsub.f32 1.0, %v1384
        %v1386 = vmul.f32 %v1383, %v1385
        %v1387 = vadd.f32 %v1383, %v1386
        %vm1388 = vweird.f32 %v1277
        %vm1389 = vweird.f32 %v1383
        %vm1390 = vmor %vm1388, %vm1389
        %v1391 = vsel %vm1390, %v1383, %v1387
        %v1392 = vand.u32 2147483647, %v1277
        %vm1393 = vcmp.eq.f32.partialorder %v1392, 8.507059e+37
        %v1394 = vand.u32 %v1277, 2147483648
        %v1395 = vor.u32 1.1754944e-38, %v1394
        %v1396 = vsel %vm1393, %v1395, %v1391
        %v1397 = vmul.f32 1.0, %v1396
        %1398 = vadd.xlane.f32.xlu0 %v402
        %v1399 = vpop.xlane.xlu0 %1398
        %1400 = vadd.xlane.f32.xlu0 %v404
        %v1401 = vpop.xlane.xlu0 %1400
        %1402 = vadd.xlane.f32.xlu0 %v407
        %v1403 = vpop.xlane.xlu0 %1402
        %1404 = vadd.xlane.f32.xlu0 %v409
        %v1405 = vpop.xlane.xlu0 %1404
        %1406 = vadd.xlane.f32.xlu0 %v412
        %v1407 = vpop.xlane.xlu0 %1406
        %1408 = vadd.xlane.f32.xlu0 %v414
        %v1409 = vpop.xlane.xlu0 %1408
        %1410 = vadd.xlane.f32.xlu0 %v417
        %v1411 = vpop.xlane.xlu0 %1410
        %1412 = vadd.xlane.f32.xlu0 %v419
        %v1413 = vpop.xlane.xlu0 %1412
        %v1414 = vmul.f32 %v1399, %v985
        %v1415 = vmul.f32 %v1401, %v985
        %v1416 = vmul.f32 %v1403, %v985
        %v1417 = vmul.f32 %v1405, %v985
        %v1418 = vmul.f32 %v1407, %v985
        %v1419 = vmul.f32 %v1409, %v985
        %v1420 = vmul.f32 %v1411, %v985
        %v1421 = vmul.f32 %v1413, %v985
        %v1422 = vsub.f32 %v402, %v1414
        %v1423 = vsub.f32 %v404, %v1415
        %v1424 = vsub.f32 %v407, %v1416
        %v1425 = vsub.f32 %v409, %v1417
        %v1426 = vsub.f32 %v412, %v1418
        %v1427 = vsub.f32 %v414, %v1419
        %v1428 = vsub.f32 %v417, %v1420
        %v1429 = vsub.f32 %v419, %v1421
        %v1430 = vmul.f32 %v1422, %v1422
        %v1431 = vmul.f32 %v1423, %v1423
        %v1432 = vmul.f32 %v1424, %v1424
        %v1433 = vmul.f32 %v1425, %v1425
        %v1434 = vmul.f32 %v1426, %v1426
        %v1435 = vmul.f32 %v1427, %v1427
        %v1436 = vmul.f32 %v1428, %v1428
        %v1437 = vmul.f32 %v1429, %v1429
        %1438 = vadd.xlane.f32.xlu0 %v1430
        %v1439 = vpop.xlane.xlu0 %1438
        %1440 = vadd.xlane.f32.xlu0 %v1431
        %v1441 = vpop.xlane.xlu0 %1440
        %1442 = vadd.xlane.f32.xlu0 %v1432
        %v1443 = vpop.xlane.xlu0 %1442
        %1444 = vadd.xlane.f32.xlu0 %v1433
        %v1445 = vpop.xlane.xlu0 %1444
        %1446 = vadd.xlane.f32.xlu0 %v1434
        %v1447 = vpop.xlane.xlu0 %1446
        %1448 = vadd.xlane.f32.xlu0 %v1435
        %v1449 = vpop.xlane.xlu0 %1448
        %1450 = vadd.xlane.f32.xlu0 %v1436
        %v1451 = vpop.xlane.xlu0 %1450
        %1452 = vadd.xlane.f32.xlu0 %v1437
        %v1453 = vpop.xlane.xlu0 %1452
        %v1454 = vmul.f32 %v1439, %v985
        %v1455 = vmul.f32 %v1441, %v985
        %v1456 = vmul.f32 %v1443, %v985
        %v1457 = vmul.f32 %v1445, %v985
        %v1458 = vmul.f32 %v1447, %v985
        %v1459 = vmul.f32 %v1449, %v985
        %v1460 = vmul.f32 %v1451, %v985
        %v1461 = vmul.f32 %v1453, %v985
        %v1462 = vadd.f32 %v1454, 1e-05
        %v1463 = vadd.f32 %v1455, 1e-05
        %v1464 = vadd.f32 %v1456, 1e-05
        %v1465 = vadd.f32 %v1457, 1e-05
        %v1466 = vadd.f32 %v1458, 1e-05
        %v1467 = vadd.f32 %v1459, 1e-05
        %v1468 = vadd.f32 %v1460, 1e-05
        %v1469 = vadd.f32 %v1461, 1e-05
        %v1470 = vrsqrt.pop %v1462
        %v1471 = vmul.f32 %v1470, %v1462
        %v1472 = vmul.f32 %v1471, %v1470
        %v1473 = vmul.f32 0.5, %v1472
        %v1474 = vsub.f32 1.5, %v1473
        %v1475 = vmul.f32 %v1470, %v1474
        %vm1476 = vweird.f32 %v1462
        %vm1477 = vweird.f32 %v1470
        %vm1478 = vmor %vm1476, %vm1477
        %v1479 = vsel %vm1478, %v1470, %v1475
        %v1480 = vrsqrt.pop %v1463
        %v1481 = vmul.f32 %v1480, %v1463
        %v1482 = vmul.f32 %v1481, %v1480
        %v1483 = vmul.f32 0.5, %v1482
        %v1484 = vsub.f32 1.5, %v1483
        %v1485 = vmul.f32 %v1480, %v1484
        %vm1486 = vweird.f32 %v1463
        %vm1487 = vweird.f32 %v1480
        %vm1488 = vmor %vm1486, %vm1487
        %v1489 = vsel %vm1488, %v1480, %v1485
        %v1490 = vrsqrt.pop %v1464
        %v1491 = vmul.f32 %v1490, %v1464
        %v1492 = vmul.f32 %v1491, %v1490
        %v1493 = vmul.f32 0.5, %v1492
        %v1494 = vsub.f32 1.5, %v1493
        %v1495 = vmul.f32 %v1490, %v1494
        %vm1496 = vweird.f32 %v1464
        %vm1497 = vweird.f32 %v1490
        %vm1498 = vmor %vm1496, %vm1497
        %v1499 = vsel %vm1498, %v1490, %v1495
        %v1500 = vrsqrt.pop %v1465
        %v1501 = vmul.f32 %v1500, %v1465
        %v1502 = vmul.f32 %v1501, %v1500
        %v1503 = vmul.f32 0.5, %v1502
        %v1504 = vsub.f32 1.5, %v1503
        %v1505 = vmul.f32 %v1500, %v1504
        %vm1506 = vweird.f32 %v1465
        %vm1507 = vweird.f32 %v1500
        %vm1508 = vmor %vm1506, %vm1507
        %v1509 = vsel %vm1508, %v1500, %v1505
        %v1510 = vrsqrt.pop %v1466
        %v1511 = vmul.f32 %v1510, %v1466
        %v1512 = vmul.f32 %v1511, %v1510
        %v1513 = vmul.f32 0.5, %v1512
        %v1514 = vsub.f32 1.5, %v1513
        %v1515 = vmul.f32 %v1510, %v1514
        %vm1516 = vweird.f32 %v1466
        %vm1517 = vweird.f32 %v1510
        %vm1518 = vmor %vm1516, %vm1517
        %v1519 = vsel %vm1518, %v1510, %v1515
        %v1520 = vrsqrt.pop %v1467
        %v1521 = vmul.f32 %v1520, %v1467
        %v1522 = vmul.f32 %v1521, %v1520
        %v1523 = vmul.f32 0.5, %v1522
        %v1524 = vsub.f32 1.5, %v1523
        %v1525 = vmul.f32 %v1520, %v1524
        %vm1526 = vweird.f32 %v1467
        %vm1527 = vweird.f32 %v1520
        %vm1528 = vmor %vm1526, %vm1527
        %v1529 = vsel %vm1528, %v1520, %v1525
        %v1530 = vrsqrt.pop %v1468
        %v1531 = vmul.f32 %v1530, %v1468
        %v1532 = vmul.f32 %v1531, %v1530
        %v1533 = vmul.f32 0.5, %v1532
        %v1534 = vsub.f32 1.5, %v1533
        %v1535 = vmul.f32 %v1530, %v1534
        %vm1536 = vweird.f32 %v1468
        %vm1537 = vweird.f32 %v1530
        %vm1538 = vmor %vm1536, %vm1537
        %v1539 = vsel %vm1538, %v1530, %v1535
        %v1540 = vrsqrt.pop %v1469
        %v1541 = vmul.f32 %v1540, %v1469
        %v1542 = vmul.f32 %v1541, %v1540
        %v1543 = vmul.f32 0.5, %v1542
        %v1544 = vsub.f32 1.5, %v1543
        %v1545 = vmul.f32 %v1540, %v1544
        %vm1546 = vweird.f32 %v1469
        %vm1547 = vweird.f32 %v1540
        %vm1548 = vmor %vm1546, %vm1547
        %v1549 = vsel %vm1548, %v1540, %v1545
        %v1550 = vmul.f32 %v1422, %v1479
        %v1551 = vmul.f32 %v1423, %v1489
        %v1552 = vmul.f32 %v1424, %v1499
        %v1553 = vmul.f32 %v1425, %v1509
        %v1554 = vmul.f32 %v1426, %v1519
        %v1555 = vmul.f32 %v1427, %v1529
        %v1556 = vmul.f32 %v1428, %v1539
        %v1557 = vmul.f32 %v1429, %v1549
        %v1558 = vperm.slane %v313, 3
        %v1559 = vmul.f32 %v1550, %v1558
        %v1560 = vmul.f32 %v1551, %v1558
        %v1561 = vmul.f32 %v1552, %v1558
        %v1562 = vmul.f32 %v1553, %v1558
        %v1563 = vmul.f32 %v1554, %v1558
        %v1564 = vmul.f32 %v1555, %v1558
        %v1565 = vmul.f32 %v1556, %v1558
        %v1566 = vmul.f32 %v1557, %v1558
        %v1567 = vperm.slane %v313, 4
        %v1568 = vadd.f32 %v1559, %v1567
        %v1569 = vadd.f32 %v1560, %v1567
        %v1570 = vadd.f32 %v1561, %v1567
        %v1571 = vadd.f32 %v1562, %v1567
        %v1572 = vadd.f32 %v1563, %v1567
        %v1573 = vadd.f32 %v1564, %v1567
        %v1574 = vadd.f32 %v1565, %v1567
        %v1575 = vadd.f32 %v1566, %v1567
        %v1576 = vmul.f32 %v1568, 0.5
        %v1577 = vmul.f32 %v1569, 0.5
        %v1578 = vmul.f32 %v1570, 0.5
        %v1579 = vmul.f32 %v1571, 0.5
        %v1580 = vmul.f32 %v1572, 0.5
        %v1581 = vmul.f32 %v1573, 0.5
        %v1582 = vmul.f32 %v1574, 0.5
        %v1583 = vmul.f32 %v1575, 0.5
        %v1584 = vmul.f32 %v1568, 0.70710677
        %v1585 = vmul.f32 %v1569, 0.70710677
        %v1586 = vmul.f32 %v1570, 0.70710677
        %v1587 = vmul.f32 %v1571, 0.70710677
        %v1588 = vmul.f32 %v1572, 0.70710677
        %v1589 = vmul.f32 %v1573, 0.70710677
        %v1590 = vmul.f32 %v1574, 0.70710677
        %v1591 = vmul.f32 %v1575, 0.70710677
        %v1592 = vmul.f32 %v1584, %v1584
        %v1593 = vmin.f32 16.0, %v1592
        %v1594 = vmul.f32 %v1593, 2.1237322e-06
        %v1595 = vadd.f32 %v1594, 0.00028619796
        %v1596 = vmul.f32 %v1593, %v1595
        %v1597 = vadd.f32 %v1596, 0.0036580483
        %v1598 = vmul.f32 %v1593, %v1597
        %v1599 = vadd.f32 %v1598, 0.05243302
        %v1600 = vmul.f32 %v1593, %v1599
        %v1601 = vadd.f32 %v1600, 0.18741608
        %v1602 = vmul.f32 %v1593, %v1601
        %v1603 = vadd.f32 %v1602, 1.1283791
        %v1604 = vmul.f32 %v1584, %v1603
        %v1605 = vmul.f32 %v1593, 3.8918573e-05
        %v1606 = vadd.f32 %v1605, 0.001143296
        %v1607 = vmul.f32 %v1593, %v1606
        %v1608 = vadd.f32 %v1607, 0.014752088
        %v1609 = vmul.f32 %v1593, %v1608
        %v1610 = vadd.f32 %v1609, 0.112945676
        %v1611 = vmul.f32 %v1593, %v1610
        %v1612 = vadd.f32 %v1611, 0.4994258
        %v1613 = vmul.f32 %v1593, %v1612
        %v1614 = vadd.f32 %v1613, 1.0
        %v1615 = vrcp.pop %v1614
        %v1616 = vmul.f32 %v1614, %v1615
        %v1617 = vsub.f32 1.0, %v1616
        %v1618 = vmul.f32 %v1615, %v1617
        %v1619 = vadd.f32 %v1615, %v1618
        %vm1620 = vweird.f32 %v1614
        %vm1621 = vweird.f32 %v1615
        %vm1622 = vmor %vm1620, %vm1621
        %v1623 = vsel %vm1622, %v1615, %v1619
        %v1624 = vand.u32 2147483647, %v1614
        %vm1625 = vcmp.eq.f32.partialorder %v1624, 8.507059e+37
        %v1626 = vand.u32 %v1614, 2147483648
        %v1627 = vor.u32 1.1754944e-38, %v1626
        %v1628 = vsel %vm1625, %v1627, %v1623
        %v1629 = vmul.f32 %v1604, %v1628
        %v1630 = vmin.f32 %v1629, 1.0
        %v1631 = vmax.f32 %v1630, -1.0
        %v1632 = vmul.f32 %v1585, %v1585
        %v1633 = vmin.f32 16.0, %v1632
        %v1634 = vmul.f32 %v1633, 2.1237322e-06
        %v1635 = vadd.f32 %v1634, 0.00028619796
        %v1636 = vmul.f32 %v1633, %v1635
        %v1637 = vadd.f32 %v1636, 0.0036580483
        %v1638 = vmul.f32 %v1633, %v1637
        %v1639 = vadd.f32 %v1638, 0.05243302
        %v1640 = vmul.f32 %v1633, %v1639
        %v1641 = vadd.f32 %v1640, 0.18741608
        %v1642 = vmul.f32 %v1633, %v1641
        %v1643 = vadd.f32 %v1642, 1.1283791
        %v1644 = vmul.f32 %v1585, %v1643
        %v1645 = vmul.f32 %v1633, 3.8918573e-05
        %v1646 = vadd.f32 %v1645, 0.001143296
        %v1647 = vmul.f32 %v1633, %v1646
        %v1648 = vadd.f32 %v1647, 0.014752088
        %v1649 = vmul.f32 %v1633, %v1648
        %v1650 = vadd.f32 %v1649, 0.112945676
        %v1651 = vmul.f32 %v1633, %v1650
        %v1652 = vadd.f32 %v1651, 0.4994258
        %v1653 = vmul.f32 %v1633, %v1652
        %v1654 = vadd.f32 %v1653, 1.0
        %v1655 = vrcp.pop %v1654
        %v1656 = vmul.f32 %v1654, %v1655
        %v1657 = vsub.f32 1.0, %v1656
        %v1658 = vmul.f32 %v1655, %v1657
        %v1659 = vadd.f32 %v1655, %v1658
        %vm1660 = vweird.f32 %v1654
        %vm1661 = vweird.f32 %v1655
        %vm1662 = vmor %vm1660, %vm1661
        %v1663 = vsel %vm1662, %v1655, %v1659
        %v1664 = vand.u32 2147483647, %v1654
        %vm1665 = vcmp.eq.f32.partialorder %v1664, 8.507059e+37
        %v1666 = vand.u32 %v1654, 2147483648
        %v1667 = vor.u32 1.1754944e-38, %v1666
        %v1668 = vsel %vm1665, %v1667, %v1663
        %v1669 = vmul.f32 %v1644, %v1668
        %v1670 = vmin.f32 %v1669, 1.0
        %v1671 = vmax.f32 %v1670, -1.0
        %v1672 = vmul.f32 %v1586, %v1586
        %v1673 = vmin.f32 16.0, %v1672
        %v1674 = vmul.f32 %v1673, 2.1237322e-06
        %v1675 = vadd.f32 %v1674, 0.00028619796
        %v1676 = vmul.f32 %v1673, %v1675
        %v1677 = vadd.f32 %v1676, 0.0036580483
        %v1678 = vmul.f32 %v1673, %v1677
        %v1679 = vadd.f32 %v1678, 0.05243302
        %v1680 = vmul.f32 %v1673, %v1679
        %v1681 = vadd.f32 %v1680, 0.18741608
        %v1682 = vmul.f32 %v1673, %v1681
        %v1683 = vadd.f32 %v1682, 1.1283791
        %v1684 = vmul.f32 %v1586, %v1683
        %v1685 = vmul.f32 %v1673, 3.8918573e-05
        %v1686 = vadd.f32 %v1685, 0.001143296
        %v1687 = vmul.f32 %v1673, %v1686
        %v1688 = vadd.f32 %v1687, 0.014752088
        %v1689 = vmul.f32 %v1673, %v1688
        %v1690 = vadd.f32 %v1689, 0.112945676
        %v1691 = vmul.f32 %v1673, %v1690
        %v1692 = vadd.f32 %v1691, 0.4994258
        %v1693 = vmul.f32 %v1673, %v1692
        %v1694 = vadd.f32 %v1693, 1.0
        %v1695 = vrcp.pop %v1694
        %v1696 = vmul.f32 %v1694, %v1695
        %v1697 = vsub.f32 1.0, %v1696
        %v1698 = vmul.f32 %v1695, %v1697
        %v1699 = vadd.f32 %v1695, %v1698
        %vm1700 = vweird.f32 %v1694
        %vm1701 = vweird.f32 %v1695
        %vm1702 = vmor %vm1700, %vm1701
        %v1703 = vsel %vm1702, %v1695, %v1699
        %v1704 = vand.u32 2147483647, %v1694
        %vm1705 = vcmp.eq.f32.partialorder %v1704, 8.507059e+37
        %v1706 = vand.u32 %v1694, 2147483648
        %v1707 = vor.u32 1.1754944e-38, %v1706
        %v1708 = vsel %vm1705, %v1707, %v1703
        %v1709 = vmul.f32 %v1684, %v1708
        %v1710 = vmin.f32 %v1709, 1.0
        %v1711 = vmax.f32 %v1710, -1.0
        %v1712 = vmul.f32 %v1587, %v1587
        %v1713 = vmin.f32 16.0, %v1712
        %v1714 = vmul.f32 %v1713, 2.1237322e-06
        %v1715 = vadd.f32 %v1714, 0.00028619796
        %v1716 = vmul.f32 %v1713, %v1715
        %v1717 = vadd.f32 %v1716, 0.0036580483
        %v1718 = vmul.f32 %v1713, %v1717
        %v1719 = vadd.f32 %v1718, 0.05243302
        %v1720 = vmul.f32 %v1713, %v1719
        %v1721 = vadd.f32 %v1720, 0.18741608
        %v1722 = vmul.f32 %v1713, %v1721
        %v1723 = vadd.f32 %v1722, 1.1283791
        %v1724 = vmul.f32 %v1587, %v1723
        %v1725 = vmul.f32 %v1713, 3.8918573e-05
        %v1726 = vadd.f32 %v1725, 0.001143296
        %v1727 = vmul.f32 %v1713, %v1726
        %v1728 = vadd.f32 %v1727, 0.014752088
        %v1729 = vmul.f32 %v1713, %v1728
        %v1730 = vadd.f32 %v1729, 0.112945676
        %v1731 = vmul.f32 %v1713, %v1730
        %v1732 = vadd.f32 %v1731, 0.4994258
        %v1733 = vmul.f32 %v1713, %v1732
        %v1734 = vadd.f32 %v1733, 1.0
        %v1735 = vrcp.pop %v1734
        %v1736 = vmul.f32 %v1734, %v1735
        %v1737 = vsub.f32 1.0, %v1736
        %v1738 = vmul.f32 %v1735, %v1737
        %v1739 = vadd.f32 %v1735, %v1738
        %vm1740 = vweird.f32 %v1734
        %vm1741 = vweird.f32 %v1735
        %vm1742 = vmor %vm1740, %vm1741
        %v1743 = vsel %vm1742, %v1735, %v1739
        %v1744 = vand.u32 2147483647, %v1734
        %vm1745 = vcmp.eq.f32.partialorder %v1744, 8.507059e+37
        %v1746 = vand.u32 %v1734, 2147483648
        %v1747 = vor.u32 1.1754944e-38, %v1746
        %v1748 = vsel %vm1745, %v1747, %v1743
        %v1749 = vmul.f32 %v1724, %v1748
        %v1750 = vmin.f32 %v1749, 1.0
        %v1751 = vmax.f32 %v1750, -1.0
        %v1752 = vmul.f32 %v1588, %v1588
        %v1753 = vmin.f32 16.0, %v1752
        %v1754 = vmul.f32 %v1753, 2.1237322e-06
        %v1755 = vadd.f32 %v1754, 0.00028619796
        %v1756 = vmul.f32 %v1753, %v1755
        %v1757 = vadd.f32 %v1756, 0.0036580483
        %v1758 = vmul.f32 %v1753, %v1757
        %v1759 = vadd.f32 %v1758, 0.05243302
        %v1760 = vmul.f32 %v1753, %v1759
        %v1761 = vadd.f32 %v1760, 0.18741608
        %v1762 = vmul.f32 %v1753, %v1761
        %v1763 = vadd.f32 %v1762, 1.1283791
        %v1764 = vmul.f32 %v1588, %v1763
        %v1765 = vmul.f32 %v1753, 3.8918573e-05
        %v1766 = vadd.f32 %v1765, 0.001143296
        %v1767 = vmul.f32 %v1753, %v1766
        %v1768 = vadd.f32 %v1767, 0.014752088
        %v1769 = vmul.f32 %v1753, %v1768
        %v1770 = vadd.f32 %v1769, 0.112945676
        %v1771 = vmul.f32 %v1753, %v1770
        %v1772 = vadd.f32 %v1771, 0.4994258
        %v1773 = vmul.f32 %v1753, %v1772
        %v1774 = vadd.f32 %v1773, 1.0
        %v1775 = vrcp.pop %v1774
        %v1776 = vmul.f32 %v1774, %v1775
        %v1777 = vsub.f32 1.0, %v1776
        %v1778 = vmul.f32 %v1775, %v1777
        %v1779 = vadd.f32 %v1775, %v1778
        %vm1780 = vweird.f32 %v1774
        %vm1781 = vweird.f32 %v1775
        %vm1782 = vmor %vm1780, %vm1781
        %v1783 = vsel %vm1782, %v1775, %v1779
        %v1784 = vand.u32 2147483647, %v1774
        %vm1785 = vcmp.eq.f32.partialorder %v1784, 8.507059e+37
        %v1786 = vand.u32 %v1774, 2147483648
        %v1787 = vor.u32 1.1754944e-38, %v1786
        %v1788 = vsel %vm1785, %v1787, %v1783
        %v1789 = vmul.f32 %v1764, %v1788
        %v1790 = vmin.f32 %v1789, 1.0
        %v1791 = vmax.f32 %v1790, -1.0
        %v1792 = vmul.f32 %v1589, %v1589
        %v1793 = vmin.f32 16.0, %v1792
        %v1794 = vmul.f32 %v1793, 2.1237322e-06
        %v1795 = vadd.f32 %v1794, 0.00028619796
        %v1796 = vmul.f32 %v1793, %v1795
        %v1797 = vadd.f32 %v1796, 0.0036580483
        %v1798 = vmul.f32 %v1793, %v1797
        %v1799 = vadd.f32 %v1798, 0.05243302
        %v1800 = vmul.f32 %v1793, %v1799
        %v1801 = vadd.f32 %v1800, 0.18741608
        %v1802 = vmul.f32 %v1793, %v1801
        %v1803 = vadd.f32 %v1802, 1.1283791
        %v1804 = vmul.f32 %v1589, %v1803
        %v1805 = vmul.f32 %v1793, 3.8918573e-05
        %v1806 = vadd.f32 %v1805, 0.001143296
        %v1807 = vmul.f32 %v1793, %v1806
        %v1808 = vadd.f32 %v1807, 0.014752088
        %v1809 = vmul.f32 %v1793, %v1808
        %v1810 = vadd.f32 %v1809, 0.112945676
        %v1811 = vmul.f32 %v1793, %v1810
        %v1812 = vadd.f32 %v1811, 0.4994258
        %v1813 = vmul.f32 %v1793, %v1812
        %v1814 = vadd.f32 %v1813, 1.0
        %v1815 = vrcp.pop %v1814
        %v1816 = vmul.f32 %v1814, %v1815
        %v1817 = vsub.f32 1.0, %v1816
        %v1818 = vmul.f32 %v1815, %v1817
        %v1819 = vadd.f32 %v1815, %v1818
        %vm1820 = vweird.f32 %v1814
        %vm1821 = vweird.f32 %v1815
        %vm1822 = vmor %vm1820, %vm1821
        %v1823 = vsel %vm1822, %v1815, %v1819
        %v1824 = vand.u32 2147483647, %v1814
        %vm1825 = vcmp.eq.f32.partialorder %v1824, 8.507059e+37
        %v1826 = vand.u32 %v1814, 2147483648
        %v1827 = vor.u32 1.1754944e-38, %v1826
        %v1828 = vsel %vm1825, %v1827, %v1823
        %v1829 = vmul.f32 %v1804, %v1828
        %v1830 = vmin.f32 %v1829, 1.0
        %v1831 = vmax.f32 %v1830, -1.0
        %v1832 = vmul.f32 %v1590, %v1590
        %v1833 = vmin.f32 16.0, %v1832
        %v1834 = vmul.f32 %v1833, 2.1237322e-06
        %v1835 = vadd.f32 %v1834, 0.00028619796
        %v1836 = vmul.f32 %v1833, %v1835
        %v1837 = vadd.f32 %v1836, 0.0036580483
        %v1838 = vmul.f32 %v1833, %v1837
        %v1839 = vadd.f32 %v1838, 0.05243302
        %v1840 = vmul.f32 %v1833, %v1839
        %v1841 = vadd.f32 %v1840, 0.18741608
        %v1842 = vmul.f32 %v1833, %v1841
        %v1843 = vadd.f32 %v1842, 1.1283791
        %v1844 = vmul.f32 %v1590, %v1843
        %v1845 = vmul.f32 %v1833, 3.8918573e-05
        %v1846 = vadd.f32 %v1845, 0.001143296
        %v1847 = vmul.f32 %v1833, %v1846
        %v1848 = vadd.f32 %v1847, 0.014752088
        %v1849 = vmul.f32 %v1833, %v1848
        %v1850 = vadd.f32 %v1849, 0.112945676
        %v1851 = vmul.f32 %v1833, %v1850
        %v1852 = vadd.f32 %v1851, 0.4994258
        %v1853 = vmul.f32 %v1833, %v1852
        %v1854 = vadd.f32 %v1853, 1.0
        %v1855 = vrcp.pop %v1854
        %v1856 = vmul.f32 %v1854, %v1855
        %v1857 = vsub.f32 1.0, %v1856
        %v1858 = vmul.f32 %v1855, %v1857
        %v1859 = vadd.f32 %v1855, %v1858
        %vm1860 = vweird.f32 %v1854
        %vm1861 = vweird.f32 %v1855
        %vm1862 = vmor %vm1860, %vm1861
        %v1863 = vsel %vm1862, %v1855, %v1859
        %v1864 = vand.u32 2147483647, %v1854
        %vm1865 = vcmp.eq.f32.partialorder %v1864, 8.507059e+37
        %v1866 = vand.u32 %v1854, 2147483648
        %v1867 = vor.u32 1.1754944e-38, %v1866
        %v1868 = vsel %vm1865, %v1867, %v1863
        %v1869 = vmul.f32 %v1844, %v1868
        %v1870 = vmin.f32 %v1869, 1.0
        %v1871 = vmax.f32 %v1870, -1.0
        %v1872 = vmul.f32 %v1591, %v1591
        %v1873 = vmin.f32 16.0, %v1872
        %v1874 = vmul.f32 %v1873, 2.1237322e-06
        %v1875 = vadd.f32 %v1874, 0.00028619796
        %v1876 = vmul.f32 %v1873, %v1875
        %v1877 = vadd.f32 %v1876, 0.0036580483
        %v1878 = vmul.f32 %v1873, %v1877
        %v1879 = vadd.f32 %v1878, 0.05243302
        %v1880 = vmul.f32 %v1873, %v1879
        %v1881 = vadd.f32 %v1880, 0.18741608
        %v1882 = vmul.f32 %v1873, %v1881
        %v1883 = vadd.f32 %v1882, 1.1283791
        %v1884 = vmul.f32 %v1591, %v1883
        %v1885 = vmul.f32 %v1873, 3.8918573e-05
        %v1886 = vadd.f32 %v1885, 0.001143296
        %v1887 = vmul.f32 %v1873, %v1886
        %v1888 = vadd.f32 %v1887, 0.014752088
        %v1889 = vmul.f32 %v1873, %v1888
        %v1890 = vadd.f32 %v1889, 0.112945676
        %v1891 = vmul.f32 %v1873, %v1890
        %v1892 = vadd.f32 %v1891, 0.4994258
        %v1893 = vmul.f32 %v1873, %v1892
        %v1894 = vadd.f32 %v1893, 1.0
        %v1895 = vrcp.pop %v1894
        %v1896 = vmul.f32 %v1894, %v1895
        %v1897 = vsub.f32 1.0, %v1896
        %v1898 = vmul.f32 %v1895, %v1897
        %v1899 = vadd.f32 %v1895, %v1898
        %vm1900 = vweird.f32 %v1894
        %vm1901 = vweird.f32 %v1895
        %vm1902 = vmor %vm1900, %vm1901
        %v1903 = vsel %vm1902, %v1895, %v1899
        %v1904 = vand.u32 2147483647, %v1894
        %vm1905 = vcmp.eq.f32.partialorder %v1904, 8.507059e+37
        %v1906 = vand.u32 %v1894, 2147483648
        %v1907 = vor.u32 1.1754944e-38, %v1906
        %v1908 = vsel %vm1905, %v1907, %v1903
        %v1909 = vmul.f32 %v1884, %v1908
        %v1910 = vmin.f32 %v1909, 1.0
        %v1911 = vmax.f32 %v1910, -1.0
        %v1912 = vadd.f32 %v1631, 1.0
        %v1913 = vadd.f32 %v1671, 1.0
        %v1914 = vadd.f32 %v1711, 1.0
        %v1915 = vadd.f32 %v1751, 1.0
        %v1916 = vadd.f32 %v1791, 1.0
        %v1917 = vadd.f32 %v1831, 1.0
        %v1918 = vadd.f32 %v1871, 1.0
        %v1919 = vadd.f32 %v1911, 1.0
        %v1920 = vmul.f32 %v1576, %v1912
        %v1921 = vmul.f32 %v1577, %v1913
        %v1922 = vmul.f32 %v1578, %v1914
        %v1923 = vmul.f32 %v1579, %v1915
        %v1924 = vmul.f32 %v1580, %v1916
        %v1925 = vmul.f32 %v1581, %v1917
        %v1926 = vmul.f32 %v1582, %v1918
        %v1927 = vmul.f32 %v1583, %v1919
        %v1928 = vpack.c.bf16 %v1921, %v1920
        %v1929 = vpack.c.bf16 %v1923, %v1922
        %v1930 = vpack.c.bf16 %v1925, %v1924
        %v1931 = vpack.c.bf16 %v1927, %v1926
        %v1932 = vld [vmem:[#allocation7] sm:$0xf]
        %v1933 = vld [vmem:[#allocation7 + $0x4] sm:$0xf]
        %v1934 = vld [vmem:[#allocation7 + $0x8] sm:$0xf]
        %v1935 = vld [vmem:[#allocation7 + $0xc] sm:$0xf]
        %v1936 = vld [vmem:[#allocation7 + $0x10] sm:$0xf]
        %v1937 = vld [vmem:[#allocation7 + $0x14] sm:$0xf]
        %v1938 = vld [vmem:[#allocation7 + $0x18] sm:$0xf]
        %v1939 = vld [vmem:[#allocation7 + $0x1c] sm:$0xf]
        %v1940 = vld [vmem:[#allocation7 + $0x20] sm:$0xf]
        %v1941 = vld [vmem:[#allocation7 + $0x24] sm:$0xf]
        %v1942 = vld [vmem:[#allocation7 + $0x28] sm:$0xf]
        %v1943 = vld [vmem:[#allocation7 + $0x2c] sm:$0xf]
        %v1944 = vld [vmem:[#allocation7 + $0x30] sm:$0xf]
        %v1945 = vld [vmem:[#allocation7 + $0x34] sm:$0xf]
        %v1946 = vld [vmem:[#allocation7 + $0x38] sm:$0xf]
        %v1947 = vld [vmem:[#allocation7 + $0x3c] sm:$0xf]
        %v1948 = vperm.slane %v313, 5
        %v1965 = vunpack.c.l.b16 %v1932
        %v1966 = vunpack.c.l.b16 %v1933
        %v1967 = vunpack.c.l.b16 %v1934
        %v1968 = vunpack.c.l.b16 %v1935
        %v1969 = vunpack.c.l.b16 %v1936
        %v1970 = vunpack.c.l.b16 %v1937
        %v1971 = vunpack.c.l.b16 %v1938
        %v1972 = vunpack.c.l.b16 %v1939
        %v1973 = vunpack.c.l.b16 %v1940
        %v1974 = vunpack.c.l.b16 %v1941
        %v1975 = vunpack.c.l.b16 %v1942
        %v1976 = vunpack.c.l.b16 %v1943
        %v1977 = vunpack.c.l.b16 %v1944
        %v1978 = vunpack.c.l.b16 %v1945
        %v1979 = vunpack.c.l.b16 %v1946
        %v1980 = vunpack.c.l.b16 %v1947
        %v1981 = vpack.c.b16 %v1966, %v1965
        %v1982 = vpack.c.b16 %v1968, %v1967
        %v1983 = vpack.c.b16 %v1970, %v1969
        %v1984 = vpack.c.b16 %v1972, %v1971
        %v1985 = vpack.c.b16 %v1974, %v1973
        %v1986 = vpack.c.b16 %v1976, %v1975
        %v1987 = vpack.c.b16 %v1978, %v1977
        %v1988 = vpack.c.b16 %v1980, %v1979
        %1997 = vmatpush.bf16.msra.mxu0 %v1988
        %1998 = vmatpush.bf16.msra.mxu0 %v1987
        %1999 = vmatpush.bf16.msra.mxu0 %v1986
        %2000 = vmatpush.bf16.msra.mxu0 %v1985
        %2001 = vmatpush.bf16.msra.mxu0 %v1984
        %2002 = vmatpush.bf16.msra.mxu0 %v1983
        %2003 = vmatpush.bf16.msra.mxu0 %v1982
        %2004 = vmatpush.bf16.msra.mxu0 %v1981
        %2005 = vmatmul.bf16.gmra.mxu0 %v1928
        %v2006 = vpop.f32.mrf.mxu0
        %v2007 = vadd.f32 %v1948, %v2006
        %v2008 = vpop.f32.mrf.mxu0
        %v2009 = vadd.f32 %v1948, %v2008
        %2010 = vmatmul.bf16.gmra.mxu0 %v1929
        %v2011 = vpop.f32.mrf.mxu0
        %v2012 = vadd.f32 %v1948, %v2011
        %v2013 = vpop.f32.mrf.mxu0
        %v2014 = vadd.f32 %v1948, %v2013
        %2015 = vmatmul.bf16.gmra.mxu0 %v1930
        %v2016 = vpop.f32.mrf.mxu0
        %v2017 = vadd.f32 %v1948, %v2016
        %v2018 = vpop.f32.mrf.mxu0
        %v2019 = vadd.f32 %v1948, %v2018
        %2020 = vmatmul.bf16.gmra.mxu0 %v1931
        %v2021 = vpop.f32.mrf.mxu0
        %v2022 = vadd.f32 %v1948, %v2021
        %v2023 = vpop.f32.mrf.mxu0
        %v2024 = vadd.f32 %v1948, %v2023
        %2025 = vdwg.mxu0
        %v2026 = vmul.f32 %v1292, %v497
        %v2027 = vmul.f32 %v1307, %v499
        %v2028 = vmul.f32 %v1322, %v502
        %v2029 = vmul.f32 %v1337, %v504
        %v2030 = vmul.f32 %v1352, %v507
        %v2031 = vmul.f32 %v1367, %v509
        %v2032 = vmul.f32 %v1382, %v512
        %v2033 = vmul.f32 %v1397, %v514
        %v2034 = vadd.f32 %v2007, %v2026
        %v2035 = vadd.f32 %v2009, %v2027
        %v2036 = vadd.f32 %v2012, %v2028
        %v2037 = vadd.f32 %v2014, %v2029
        %v2038 = vadd.f32 %v2017, %v2030
        %v2039 = vadd.f32 %v2019, %v2031
        %v2040 = vadd.f32 %v2022, %v2032
        %v2041 = vadd.f32 %v2024, %v2033
        %2042 = vst [vmem:[%s310] sm:$0xff] %v2034
        %2043 = vst [vmem:[%s310 + $0x8] sm:$0xff] %v2035
        %2044 = vst [vmem:[%s310 + $0x10] sm:$0xff] %v2036
        %2045 = vst [vmem:[%s310 + $0x18] sm:$0xff] %v2037
        %2046 = vst [vmem:[%s310 + $0x20] sm:$0xff] %v2038
        %2047 = vst [vmem:[%s310 + $0x28] sm:$0xff] %v2039
        %2048 = vst [vmem:[%s310 + $0x30] sm:$0xff] %v2040
        %2049 = vst [vmem:[%s310 + $0x38] sm:$0xff] %v2041
        %s2050 = sand.u32 %s142, 1
        %s2051 = scalar_lea.sflag [#allocation4], %s2050
        %s2052 = sand.u32 %s142, 1
        %s2053 = smul.addr %s2052, 64
        %s2054 = scalar_lea.vmem [#allocation11], %s2053
        // Predicated region
        $region61: #{tpu_custom_call.1} parent=39 // pred_check
          %p2055 = pneg %p152
        $region62: #{tpu_custom_call.1} parent=39 // pred_check_branch
          %2057 = sbr.rel (%p2055) target = $region64
        $region63: #{tpu_custom_call.1} parent=39 // pred_region
          %s2058 = smul.u32 8, %s24
          %2060 = vsyncadd %s2051, 0
          %s2061 = smul.addr %s2058, 8
          %s2062 = scalar_lea.hbm %s5, %s2061
          %s2063 = sshll.u32 %s2054, 4
          %s2064 = int_to_ptr.vmem [resolvable:$true] %s2063
          %s2065 = sshll.u32 %s2062, 4
          %s2066 = int_to_ptr.hbm [resolvable:$true] %s2065
          %2071 = dma.vmem_to_hbm [thread:$0]  %s2064, 1024, %s2066, %s2051, 128, 128, 8
        $region64: #{tpu_custom_call.1} parent=39 // pred_fallthru
          _
      $region40: #{tpu_custom_call.1} parent=5 // pred_fallthru
        _
      %p2072 = scmp.le.s32.totalorder 2, %s19
      // Predicated region
      $region65: #{tpu_custom_call.1} parent=5 // pred_check
        %p2073 = pneg %p2072
      $region66: #{tpu_custom_call.1} parent=5 // pred_check_branch
        %2075 = sbr.rel (%p2073) target = $region68
      $region67: #{tpu_custom_call.1} parent=5 // pred_region
        %s2076 = ssub.s32 %s19, 2
        // Predicated region
        $region69: #{tpu_custom_call.1} parent=67 // pred_check
          %p2077 = pneg %p158
        $region70: #{tpu_custom_call.1} parent=67 // pred_check_branch
          %2079 = sbr.rel (%p2077) target = $region72
        $region71: #{tpu_custom_call.1} parent=67 // pred_region
          %s2080 = sand.u32 %s143, 1
          %s2081 = scalar_lea.sflag [#allocation4], %s2080
          %s2082 = sand.u32 %s143, 1
          %s2083 = smul.addr %s2082, 64
          %s2084 = scalar_lea.vmem [#allocation11], %s2083
          %2086 = dma.done %s2081, 1024
        $region72: #{tpu_custom_call.1} parent=67 // pred_fallthru
          _
      $region68: #{tpu_custom_call.1} parent=5 // pred_fallthru
        _
    $region6: #{tpu_custom_call.1} parent=1 // loop_footer
      %s23 = sadd.s32 1, %s19
    $region7: #{tpu_custom_call.1} parent=1 // loop_footer_branch
      %18 = sbr.rel target = $region3
    $region8: #{tpu_custom_call.1} parent=1 // loop_exit
      _
    %2087 = vsyncpa [#allocation3], 1
    %s2088 = scalar_lea.sflag [#allocation3], 1
    %2089 = vsyncpa %s2088, 1
    %2090 = vsyncpa [#allocation6], 1
    %2091 = vsyncpa [#allocation9], 1
    %2092 = vsyncpa [#allocation4], 1
    %s2093 = scalar_lea.sflag [#allocation4], 1
    %2094 = vsyncpa %s2093, 1

</llo_original>
